<compile_context>
chip_gen: v7x
topology: tpu7x:2x2x1
jax: 0.10.0
libtpu: 0.0.40
codegen_flags: <defaults>
</compile_context>

<pallas_src>
from typing import NamedTuple

import jax
import jax.numpy as jnp
from jax.experimental import pallas as pl
from jax.experimental.pallas import tpu as pltpu


def _attention_kernel(h_ref, enc_ref, red_ref, exp_ref, wh_ref, wc_ref, out_ref):
    """One batch block, whole sequence, everything lane-folded.

    Shapes (BH = block_b * H):
      h_ref   (1, BH)        decoder state, batch folded onto lanes
      enc_ref (S, BH)        encoder outputs for this batch block
      red_ref (BH, block_b)  segmented-reduce matrix (sums the H lanes of a batch)
      exp_ref (block_b, BH)  broadcast matrix (copies one score across H lanes)
      wh_ref  (BH, BH)       block-diagonal of W[:, :H].T  (h half of the Linear)
      wc_ref  (BH, BH)       block-diagonal of W[:, H:].T  (c half of the Linear)
      out_ref (1, BH)
    """
    h_flat = h_ref[...]                                   # (1, BH)
    enc = enc_ref[...]                                    # (S, BH)

    # scores[s, b] = <h[b, :], enc[s, b, :]>: lane-dense VPU multiply followed
    # by a block-diagonal MXU reduction over each batch's H lanes.
    scores = jnp.dot(enc * h_flat, red_ref[...],
                     preferred_element_type=jnp.float32)  # (S, block_b)

    # softmax over the sequence (sublane axis); temporaries stay 2-D.
    m = jnp.max(scores, axis=0, keepdims=True)            # (1, block_b)
    p = jnp.exp(scores - m)                               # (S, block_b)
    l = jnp.sum(p, axis=0, keepdims=True)                 # (1, block_b)

    # broadcast the per-(s, b) weights back across that batch's H lanes (MXU).
    p_wide = jnp.dot(p, exp_ref[...],
                     preferred_element_type=jnp.float32)  # (S, BH)
    l_wide = jnp.dot(l, exp_ref[...],
                     preferred_element_type=jnp.float32)  # (1, BH)

    # context, still lane-folded: c[b*H + i] = sum_s a[s, b] * enc[s, b, i]
    c_flat = jnp.sum(p_wide * enc, axis=0, keepdims=True) / l_wide   # (1, BH)

    # ha = tanh(tanh(concat([h, c]) @ W.T)); the concat disappears into the two
    # block-diagonal weight halves, so the result stays lane-folded and the
    # store is a single dense (1, BH) slab.
    lin = (jnp.dot(h_flat, wh_ref[...], preferred_element_type=jnp.float32)
           + jnp.dot(c_flat, wc_ref[...], preferred_element_type=jnp.float32))
    out_ref[...] = jnp.tanh(jnp.tanh(lin)).astype(out_ref.dtype)


class AttentionParams(NamedTuple):
    hdim: int
    block_b: int
    reduce_mat: jax.Array    # (block_b*H, block_b)
    expand_mat: jax.Array    # (block_b, block_b*H)
    w_h: jax.Array           # (block_b*H, block_b*H)
    w_c: jax.Array           # (block_b*H, block_b*H)


def prepare_attention_params(weight, batch, *, block_b=None):
    """Build the constant kernel operands ONCE, outside the decode loop.

    weight: PyTorch Linear weight, shape (H, 2H) (out_features, in_features).
    """
    weight = jnp.asarray(weight, jnp.float32)
    hdim = weight.shape[0]
    assert weight.shape == (hdim, 2 * hdim), "expected (H, 2H) Linear weight"

    if block_b is None:
        block_b = batch
        # v7x has two TensorCores; give each a batch block when the folded lane
        # width stays dense (>= 256 lanes) and 128-aligned.  Harmless on the
        # single-core v5e/v6e (same total bytes, one extra grid step).
        if (batch % 2 == 0 and ((batch // 2) * hdim) % 128 == 0
                and (batch // 2) * hdim >= 256):
            block_b = batch // 2
    assert batch % block_b == 0, "block_b must divide the batch"
    assert block_b == batch or (block_b * hdim) % 128 == 0, (
        "block_b * H must be lane-aligned (multiple of 128) unless block_b == B")

    eye_b = jnp.eye(block_b, dtype=jnp.float32)
    reduce_mat = jnp.repeat(eye_b, hdim, axis=0)        # (block_b*H, block_b)
    expand_mat = reduce_mat.T                           # (block_b, block_b*H)
    # concat([h, c]) @ W.T == h @ W[:, :H].T + c @ W[:, H:].T, each half lifted
    # to a block-diagonal operand so the kernel never un-folds the lanes.
    # (Quadratic in block_b*H; fine for small-H attention like this module.)
    w_h = jnp.kron(eye_b, weight[:, :hdim].T)           # (block_b*H, block_b*H)
    w_c = jnp.kron(eye_b, weight[:, hdim:].T)
    return AttentionParams(hdim, block_b, reduce_mat, expand_mat, w_h, w_c)


def attention_forward(h, enc_outputs, params):
    """h: (1, B, H) f32, enc_outputs: (S, B, H) f32 -> ha: (1, B, H) f32."""
    _, B, H = h.shape
    S = enc_outputs.shape[0]
    assert H == params.hdim
    bb = params.block_b
    assert B % bb == 0
    BH = bb * H

    # Free, row-major reshapes: batch*hidden folded onto the lane axis.
    h_flat = h.reshape(1, B * H)
    enc_flat = enc_outputs.reshape(S, B * H)

    out = pl.pallas_call(
        _attention_kernel,
        out_shape=jax.ShapeDtypeStruct((1, B * H), jnp.float32),
        grid_spec=pltpu.PrefetchScalarGridSpec(
            num_scalar_prefetch=0,
            grid=(B // bb,),
            in_specs=[
                pl.BlockSpec((1, BH), lambda bi: (0, bi)),     # h (lane-folded)
                pl.BlockSpec((S, BH), lambda bi: (0, bi)),     # enc (lane-folded)
                pl.BlockSpec((BH, bb), lambda bi: (0, 0)),     # reduce matrix
                pl.BlockSpec((bb, BH), lambda bi: (0, 0)),     # expand matrix
                pl.BlockSpec((BH, BH), lambda bi: (0, 0)),     # block-diag W_h
                pl.BlockSpec((BH, BH), lambda bi: (0, 0)),     # block-diag W_c
            ],
            out_specs=pl.BlockSpec((1, BH), lambda bi: (0, bi)),
        ),
        compiler_params=pltpu.CompilerParams(
            dimension_semantics=("parallel",),
            vmem_limit_bytes=48 * 1024 * 1024,
        ),
    )(h_flat, enc_flat, params.reduce_mat, params.expand_mat,
      params.w_h, params.w_c)

    return out.reshape(1, B, H)


def _reference(h, enc_outputs, weight):
    # pure-JAX mirror of the PyTorch forward, pinned to full-f32 matmuls.
    scores = jnp.einsum("bh,sbh->sb", h[0], enc_outputs, precision="highest")
    a = jax.nn.softmax(scores, axis=0)
    c = jnp.einsum("sb,sbh->bh", a, enc_outputs, precision="highest")
    hc = jnp.concatenate([h[0], c], axis=-1)
    ha = jnp.tanh(jnp.tanh(jnp.dot(hc, weight.T, precision="highest")))
    return ha[None, :, :]


if __name__ == "__main__":
    # Keep any XLA-side dots (reference, interpret-mode kernel dots) in full f32
    # so the comparison is precision-stable across backends.
    jax.config.update("jax_default_matmul_precision", "highest")

    key = jax.random.PRNGKey(0)
    k_h, k_enc, k_w = jax.random.split(key, 3)

    # small shapes implied by the module: seq=8, batch=4, hidden=32
    S, B, H = 8, 4, 32
    h = jax.random.normal(k_h, (1, B, H), dtype=jnp.float32)
    enc_outputs = jax.random.normal(k_enc, (S, B, H), dtype=jnp.float32)
    # deterministic weight for Linear(2H -> H, bias=False); PyTorch layout (out, in)
    bound = 1.0 / jnp.sqrt(2.0 * H)
    weight = jax.random.uniform(k_w, (H, 2 * H), jnp.float32, -bound, bound)

    params = prepare_attention_params(weight, B)   # built once, outside hot path
    ha = attention_forward(h, enc_outputs, params)
    jax.block_until_ready(ha)

    ref = _reference(h, enc_outputs, weight)
    assert ha.shape == (1, B, H)
    # tolerance covers MXU f32 multi-pass / transcendental ulp differences
    assert jnp.allclose(ha, ref, atol=1e-4, rtol=1e-4), "mismatch vs reference"

    # exercise the multi-batch-block "parallel" grid path (B=16 -> two blocks
    # of 8, S=20 not a multiple of 8 -- handled without padding or masking).
    S2, B2 = 20, 16
    h2 = jax.random.normal(k_h, (1, B2, H), dtype=jnp.float32)
    enc2 = jax.random.normal(k_enc, (S2, B2, H), dtype=jnp.float32)
    params2 = prepare_attention_params(weight, B2)
    assert params2.block_b == 8           # grid = (2,): both v7x cores get work
    ha2 = attention_forward(h2, enc2, params2)
    jax.block_until_ready(ha2)
    ref2 = _reference(h2, enc2, weight)
    assert ha2.shape == (1, B2, H)
    assert jnp.allclose(ha2, ref2, atol=1e-4, rtol=1e-4), \
        "mismatch vs reference (multi-block)"

    print("KERNEL_OK")
</pallas_src>

<mosaic_0001>
module attributes {stable_mosaic.version = 11 : i64} {
  func.func @_attention_kernel(%arg0: i32, %arg1: memref<1x128xf32, #tpu.memory_space<vmem>>, %arg2: memref<8x128xf32, #tpu.memory_space<vmem>>, %arg3: memref<128x4xf32, #tpu.memory_space<vmem>>, %arg4: memref<4x128xf32, #tpu.memory_space<vmem>>, %arg5: memref<128x128xf32, #tpu.memory_space<vmem>>, %arg6: memref<128x128xf32, #tpu.memory_space<vmem>>, %arg7: memref<1x128xf32, #tpu.memory_space<vmem>>) attributes {dimension_semantics = [#tpu.dimension_semantics<parallel>], iteration_bounds = array<i64: 1>, scalar_prefetch = 0 : i64, scratch_operands = 0 : i64, tpu.core_type = #tpu.core_type<tc>, window_params = [{transform_indices = @transform_0, window_bounds = array<i64: 1, 128>}, {transform_indices = @transform_1, window_bounds = array<i64: 8, 128>}, {pipeline_mode = #tpu.pipeline_mode<synchronous>, transform_indices = @transform_2, window_bounds = array<i64: 128, 4>}, {pipeline_mode = #tpu.pipeline_mode<synchronous>, transform_indices = @transform_3, window_bounds = array<i64: 4, 128>}, {pipeline_mode = #tpu.pipeline_mode<synchronous>, transform_indices = @transform_4, window_bounds = array<i64: 128, 128>}, {pipeline_mode = #tpu.pipeline_mode<synchronous>, transform_indices = @transform_5, window_bounds = array<i64: 128, 128>}, {transform_indices = @transform_6, window_bounds = array<i64: 1, 128>}]} {
    %c0 = arith.constant 0 : index
    %c0_0 = arith.constant 0 : index
    %0 = vector.load %arg1[%c0, %c0_0] : memref<1x128xf32, #tpu.memory_space<vmem>>, vector<1x128xf32>
    %c0_1 = arith.constant 0 : index
    %c0_2 = arith.constant 0 : index
    %1 = vector.load %arg2[%c0_1, %c0_2] : memref<8x128xf32, #tpu.memory_space<vmem>>, vector<8x128xf32>
    %2 = vector.broadcast %0 : vector<1x128xf32> to vector<8x128xf32>
    %3 = arith.mulf %1, %2 : vector<8x128xf32>
    %c0_3 = arith.constant 0 : index
    %c0_4 = arith.constant 0 : index
    %4 = vector.load %arg3[%c0_3, %c0_4] : memref<128x4xf32, #tpu.memory_space<vmem>>, vector<128x4xf32>
    %cst = arith.constant dense<0.000000e+00> : vector<8x4xf32>
    %5 = tpu.matmul %3, %4, %cst {dimension_numbers = #tpu.dot_dimension_numbers<[1], [0], [0], [1], [0, 0, 1, 1], [], []>, precision = #tpu.contract_precision<fp32>} : vector<8x128xf32>, vector<128x4xf32>, vector<8x4xf32> -> vector<8x4xf32>
    %cst_5 = arith.constant dense<0xFF800000> : vector<4xf32>
    %6 = vector.multi_reduction <maximumf>, %5, %cst_5 [0] : vector<8x4xf32> to vector<4xf32>
    %7 = vector.shape_cast %6 : vector<4xf32> to vector<1x4xf32>
    %8 = vector.broadcast %7 : vector<1x4xf32> to vector<8x4xf32>
    %9 = arith.subf %5, %8 : vector<8x4xf32>
    %10 = math.exp %9 : vector<8x4xf32>
    %cst_6 = arith.constant dense<0.000000e+00> : vector<4xf32>
    %11 = vector.multi_reduction <add>, %10, %cst_6 [0] : vector<8x4xf32> to vector<4xf32>
    %12 = vector.shape_cast %11 : vector<4xf32> to vector<1x4xf32>
    %c0_7 = arith.constant 0 : index
    %c0_8 = arith.constant 0 : index
    %13 = vector.load %arg4[%c0_7, %c0_8] : memref<4x128xf32, #tpu.memory_space<vmem>>, vector<4x128xf32>
    %cst_9 = arith.constant dense<0.000000e+00> : vector<8x128xf32>
    %14 = tpu.matmul %10, %13, %cst_9 {dimension_numbers = #tpu.dot_dimension_numbers<[1], [0], [0], [1], [0, 0, 1, 1], [], []>, precision = #tpu.contract_precision<fp32>} : vector<8x4xf32>, vector<4x128xf32>, vector<8x128xf32> -> vector<8x128xf32>
    %c0_10 = arith.constant 0 : index
    %c0_11 = arith.constant 0 : index
    %15 = vector.load %arg4[%c0_10, %c0_11] : memref<4x128xf32, #tpu.memory_space<vmem>>, vector<4x128xf32>
    %cst_12 = arith.constant dense<0.000000e+00> : vector<1x128xf32>
    %16 = tpu.matmul %12, %15, %cst_12 {dimension_numbers = #tpu.dot_dimension_numbers<[1], [0], [0], [1], [0, 0, 1, 1], [], []>, precision = #tpu.contract_precision<fp32>} : vector<1x4xf32>, vector<4x128xf32>, vector<1x128xf32> -> vector<1x128xf32>
    %17 = arith.mulf %14, %1 : vector<8x128xf32>
    %cst_13 = arith.constant dense<0.000000e+00> : vector<128xf32>
    %18 = vector.multi_reduction <add>, %17, %cst_13 [0] : vector<8x128xf32> to vector<128xf32>
    %19 = vector.shape_cast %18 : vector<128xf32> to vector<1x128xf32>
    %20 = arith.divf %19, %16 : vector<1x128xf32>
    %c0_14 = arith.constant 0 : index
    %c0_15 = arith.constant 0 : index
    %21 = vector.load %arg5[%c0_14, %c0_15] : memref<128x128xf32, #tpu.memory_space<vmem>>, vector<128x128xf32>
    %cst_16 = arith.constant dense<0.000000e+00> : vector<1x128xf32>
    %22 = tpu.matmul %0, %21, %cst_16 {dimension_numbers = #tpu.dot_dimension_numbers<[1], [0], [0], [1], [0, 0, 1, 1], [], []>, precision = #tpu.contract_precision<fp32>} : vector<1x128xf32>, vector<128x128xf32>, vector<1x128xf32> -> vector<1x128xf32>
    %c0_17 = arith.constant 0 : index
    %c0_18 = arith.constant 0 : index
    %23 = vector.load %arg6[%c0_17, %c0_18] : memref<128x128xf32, #tpu.memory_space<vmem>>, vector<128x128xf32>
    %cst_19 = arith.constant dense<0.000000e+00> : vector<1x128xf32>
    %24 = tpu.matmul %20, %23, %cst_19 {dimension_numbers = #tpu.dot_dimension_numbers<[1], [0], [0], [1], [0, 0, 1, 1], [], []>, precision = #tpu.contract_precision<fp32>} : vector<1x128xf32>, vector<128x128xf32>, vector<1x128xf32> -> vector<1x128xf32>
    %25 = arith.addf %22, %24 : vector<1x128xf32>
    %26 = math.tanh %25 : vector<1x128xf32>
    %27 = math.tanh %26 : vector<1x128xf32>
    %c0_20 = arith.constant 0 : index
    %c0_21 = arith.constant 0 : index
    %28 = vector.load %arg7[%c0_20, %c0_21] : memref<1x128xf32, #tpu.memory_space<vmem>>, vector<1x128xf32>
    tpu.vector_store %arg7[%c0_20, %c0_21], %27 {strides = array<i32>} : memref<1x128xf32, #tpu.memory_space<vmem>>, vector<1x128xf32>,
    return
  }
  func.func @transform_0(%arg0: i32) -> (i32, i32) {
    %c0_i32 = arith.constant 0 : i32
    %c0_i32_0 = arith.constant 0 : i32
    return %c0_i32, %arg0 : i32, i32
  }
  func.func @transform_1(%arg0: i32) -> (i32, i32) {
    %c0_i32 = arith.constant 0 : i32
    %c0_i32_0 = arith.constant 0 : i32
    return %c0_i32, %arg0 : i32, i32
  }
  func.func @transform_2(%arg0: i32) -> (i32, i32) {
    %c0_i32 = arith.constant 0 : i32
    %c0_i32_0 = arith.constant 0 : i32
    %c0_i32_1 = arith.constant 0 : i32
    return %c0_i32, %c0_i32_0 : i32, i32
  }
  func.func @transform_3(%arg0: i32) -> (i32, i32) {
    %c0_i32 = arith.constant 0 : i32
    %c0_i32_0 = arith.constant 0 : i32
    %c0_i32_1 = arith.constant 0 : i32
    return %c0_i32, %c0_i32_0 : i32, i32
  }
  func.func @transform_4(%arg0: i32) -> (i32, i32) {
    %c0_i32 = arith.constant 0 : i32
    %c0_i32_0 = arith.constant 0 : i32
    %c0_i32_1 = arith.constant 0 : i32
    return %c0_i32, %c0_i32_0 : i32, i32
  }
  func.func @transform_5(%arg0: i32) -> (i32, i32) {
    %c0_i32 = arith.constant 0 : i32
    %c0_i32_0 = arith.constant 0 : i32
    %c0_i32_1 = arith.constant 0 : i32
    return %c0_i32, %c0_i32_0 : i32, i32
  }
  func.func @transform_6(%arg0: i32) -> (i32, i32) {
    %c0_i32 = arith.constant 0 : i32
    %c0_i32_0 = arith.constant 0 : i32
    return %c0_i32, %arg0 : i32, i32
  }
}

</mosaic_0001>

<llo_original>
// kernel: tpu_custom_call.1
$region0: #{tpu_custom_call.1}
  #allocation0 [shape = 'u32[]', space=smem, size = 0x4, offset = 0x4, fixed_abs, tag = 'smem constant byte address 0x4 - core index']
  #allocation1 [shape = 'u32[144,128]{1,0:T(1,128)}', space=vmem, size = 0x12000, scoped, tag = 'internal scratch']
  %s0 = inlined_call_operand.vmem [shape: f32[1,128], index: 0, kind: input, shape index: {}]
  %s1 = inlined_call_operand.vmem [shape: f32[8,128], index: 1, kind: input, shape index: {}]
  %s2 = inlined_call_operand.vmem [shape: f32[128,4], index: 2, kind: input, shape index: {}]
  %s3 = inlined_call_operand.vmem [shape: f32[4,128], index: 3, kind: input, shape index: {}]
  %s4 = inlined_call_operand.vmem [shape: f32[128,128], index: 4, kind: input, shape index: {}]
  %s5 = inlined_call_operand.hbm [shape: f32[128,128], index: 5, kind: input, shape index: {}]
  %s6 = inlined_call_operand.hbm [shape: f32[1,128], index: 6, kind: output, shape index: {}]
  %s7 = sld [smem:[#allocation0]]
  $region38: #{tpu_custom_call.1} parent=0
    _
  %s9 = ssub.s32 1, %s7
  %s10 = scalar_select 0, %s9, %s7
  $region1: #{tpu_custom_call.1} parent=0
    #allocation2 [shape = 'u8[65536]{0}', space=vmem, size = 0x10000, scoped, tag = 'input window, operand 5, single buffered']
    #allocation3 [shape = 's32[1]{0}', space=sflag, size = 0x4, scoped, tag = 'scoped memory for tpu_custom_call.1']
    #allocation4 [shape = 's32[1]{0}', space=sflag, size = 0x4, scoped, tag = 'scoped memory for tpu_custom_call.1']
    #allocation5 [shape = 'u8[512]{0}', space=vmem, size = 0x400, scoped, tag = 'output window, operand 0, single buffered']
    %11 = vsyncpa [#allocation3], 0
    %12 = vsyncpa [#allocation4], 0
    // Predicated region
    $region2: #{tpu_custom_call.1} parent=1 // pred_check
      _
    $region3: #{tpu_custom_call.1} parent=1 // pred_check_branch
      %14 = sbr.rel (0) target = $region5
    $region4: #{tpu_custom_call.1} parent=1 // pred_region
      _
    $region5: #{tpu_custom_call.1} parent=1 // pred_fallthru
      _
    // Predicated region
    $region6: #{tpu_custom_call.1} parent=1 // pred_check
      _
    $region7: #{tpu_custom_call.1} parent=1 // pred_check_branch
      %16 = sbr.rel (0) target = $region9
    $region8: #{tpu_custom_call.1} parent=1 // pred_region
      _
    $region9: #{tpu_custom_call.1} parent=1 // pred_fallthru
      _
    // Predicated region
    $region10: #{tpu_custom_call.1} parent=1 // pred_check
      _
    $region11: #{tpu_custom_call.1} parent=1 // pred_check_branch
      %18 = sbr.rel (0) target = $region13
    $region12: #{tpu_custom_call.1} parent=1 // pred_region
      _
    $region13: #{tpu_custom_call.1} parent=1 // pred_fallthru
      _
    // Predicated region
    $region14: #{tpu_custom_call.1} parent=1 // pred_check
      _
    $region15: #{tpu_custom_call.1} parent=1 // pred_check_branch
      %20 = sbr.rel (0) target = $region17
    $region16: #{tpu_custom_call.1} parent=1 // pred_region
      _
    $region17: #{tpu_custom_call.1} parent=1 // pred_fallthru
      _
    // Predicated region
    $region18: #{tpu_custom_call.1} parent=1 // pred_check
      _
    $region19: #{tpu_custom_call.1} parent=1 // pred_check_branch
      %22 = sbr.rel (0) target = $region21
    $region20: #{tpu_custom_call.1} parent=1 // pred_region
      _
    $region21: #{tpu_custom_call.1} parent=1 // pred_fallthru
      _
    // Predicated region
    $region22: #{tpu_custom_call.1} parent=1 // pred_check
      _
    $region23: #{tpu_custom_call.1} parent=1 // pred_check_branch
      %24 = sbr.rel (0) target = $region25
    $region24: #{tpu_custom_call.1} parent=1 // pred_region
      %s26 = ssub.s32 2048, 2048
      %27 = vsyncadd [#allocation3], %s26
      %s28 = sshll.u32 [#allocation2], 4
      %s29 = int_to_ptr.vmem [resolvable:$true] %s28
      %34 = dma.hbm_to_vmem [thread:$0]  %s5, 2048, %s29, [#allocation3], 128, 128, 8
    $region25: #{tpu_custom_call.1} parent=1 // pred_fallthru
      _
    // Predicated region
    $region26: #{tpu_custom_call.1} parent=1 // pred_check
      _
    $region27: #{tpu_custom_call.1} parent=1 // pred_check_branch
      %36 = sbr.rel (0) target = $region29
    $region28: #{tpu_custom_call.1} parent=1 // pred_region
      %37 = dma.done [#allocation3], 2048
    $region29: #{tpu_custom_call.1} parent=1 // pred_fallthru
      _
    %v38 = vld [vmem:[%s0] sm:$0x1]
    %v39 = vld [vmem:[%s1] sm:$0xff]
    %v41 = vlaneseq
    %v42 = vshrl.u32 %v41, 7
    %v43 = vsub.s32 0, %v42
    %v44 = vrot.slane %v38, %v43
    %v46 = vmul.f32 %v39, %v44
    %v47 = vld [vmem:[%s2] sm:$0xff]
    %v48 = vld [vmem:[%s2 + $0x8] sm:$0xff]
    %v49 = vld [vmem:[%s2 + $0x10] sm:$0xff]
    %v50 = vld [vmem:[%s2 + $0x18] sm:$0xff]
    %v51 = vld [vmem:[%s2 + $0x20] sm:$0xff]
    %v52 = vld [vmem:[%s2 + $0x28] sm:$0xff]
    %v53 = vld [vmem:[%s2 + $0x30] sm:$0xff]
    %v54 = vld [vmem:[%s2 + $0x38] sm:$0xff]
    %v55 = vld [vmem:[%s2 + $0x40] sm:$0xff]
    %v56 = vld [vmem:[%s2 + $0x48] sm:$0xff]
    %v57 = vld [vmem:[%s2 + $0x50] sm:$0xff]
    %v58 = vld [vmem:[%s2 + $0x58] sm:$0xff]
    %v59 = vld [vmem:[%s2 + $0x60] sm:$0xff]
    %v60 = vld [vmem:[%s2 + $0x68] sm:$0xff]
    %v61 = vld [vmem:[%s2 + $0x70] sm:$0xff]
    %v62 = vld [vmem:[%s2 + $0x78] sm:$0xff]
    %63 = vmatprep.subr.mxu0 0.0
    %v64 = vand.u32 %v47, 4294901760
    %65 = vmatpush1.msra.mxu0 %v64
    %66 = vmatprep.subr.mxu0 0.0
    %v67 = vand.u32 %v48, 4294901760
    %68 = vmatpush1.msra.mxu0 %v67
    %69 = vmatprep.subr.mxu0 0.0
    %v70 = vand.u32 %v49, 4294901760
    %71 = vmatpush1.msra.mxu0 %v70
    %72 = vmatprep.subr.mxu0 0.0
    %v73 = vand.u32 %v50, 4294901760
    %74 = vmatpush1.msra.mxu0 %v73
    %75 = vmatprep.subr.mxu0 0.0
    %v76 = vand.u32 %v51, 4294901760
    %77 = vmatpush1.msra.mxu0 %v76
    %78 = vmatprep.subr.mxu0 0.0
    %v79 = vand.u32 %v52, 4294901760
    %80 = vmatpush1.msra.mxu0 %v79
    %81 = vmatprep.subr.mxu0 0.0
    %v82 = vand.u32 %v53, 4294901760
    %83 = vmatpush1.msra.mxu0 %v82
    %84 = vmatprep.subr.mxu0 0.0
    %v85 = vand.u32 %v54, 4294901760
    %86 = vmatpush1.msra.mxu0 %v85
    %87 = vmatprep.subr.mxu0 0.0
    %v88 = vand.u32 %v55, 4294901760
    %89 = vmatpush1.msra.mxu0 %v88
    %90 = vmatprep.subr.mxu0 0.0
    %v91 = vand.u32 %v56, 4294901760
    %92 = vmatpush1.msra.mxu0 %v91
    %93 = vmatprep.subr.mxu0 0.0
    %v94 = vand.u32 %v57, 4294901760
    %95 = vmatpush1.msra.mxu0 %v94
    %96 = vmatprep.subr.mxu0 0.0
    %v97 = vand.u32 %v58, 4294901760
    %98 = vmatpush1.msra.mxu0 %v97
    %99 = vmatprep.subr.mxu0 0.0
    %v100 = vand.u32 %v59, 4294901760
    %101 = vmatpush1.msra.mxu0 %v100
    %102 = vmatprep.subr.mxu0 0.0
    %v103 = vand.u32 %v60, 4294901760
    %104 = vmatpush1.msra.mxu0 %v103
    %105 = vmatprep.subr.mxu0 0.0
    %v106 = vand.u32 %v61, 4294901760
    %107 = vmatpush1.msra.mxu0 %v106
    %108 = vmatprep.subr.mxu0 0.0
    %v109 = vand.u32 %v62, 4294901760
    %110 = vmatpush1.msra.mxu0 %v109
    %111 = vmatprep.subr.mxu0 0.0
    %112 = vmatpush1.msra.mxu0 0.0
    %113 = vmatprep.subr.mxu0 0.0
    %114 = vmatpush1.msra.mxu0 0.0
    %115 = vmatprep.subr.mxu0 0.0
    %116 = vmatpush1.msra.mxu0 0.0
    %117 = vmatprep.subr.mxu0 0.0
    %118 = vmatpush1.msra.mxu0 0.0
    %119 = vmatprep.subr.mxu0 0.0
    %120 = vmatpush1.msra.mxu0 0.0
    %121 = vmatprep.subr.mxu0 0.0
    %122 = vmatpush1.msra.mxu0 0.0
    %123 = vmatprep.subr.mxu0 0.0
    %124 = vmatpush1.msra.mxu0 0.0
    %125 = vmatprep.subr.mxu0 0.0
    %126 = vmatpush1.msra.mxu0 0.0
    %127 = vmatprep.subr.mxu0 0.0
    %128 = vmatpush1.msra.mxu0 0.0
    %129 = vmatprep.subr.mxu0 0.0
    %130 = vmatpush1.msra.mxu0 0.0
    %131 = vmatprep.subr.mxu0 0.0
    %132 = vmatpush1.msra.mxu0 0.0
    %133 = vmatprep.subr.mxu0 0.0
    %134 = vmatpush1.msra.mxu0 0.0
    %135 = vmatprep.subr.mxu0 0.0
    %136 = vmatpush1.msra.mxu0 0.0
    %137 = vmatprep.subr.mxu0 0.0
    %138 = vmatpush1.msra.mxu0 0.0
    %139 = vmatprep.subr.mxu0 0.0
    %140 = vmatpush1.msra.mxu0 0.0
    %141 = vmatprep.subr.mxu0 0.0
    %142 = vmatpush1.msra.mxu0 0.0
    %143 = vmatprep.mubr.f32.mxu0 0.0
    %v144 = vand.u32 %v46, 4294901760
    %v145 = vsub.f32 %v46, %v144
    %v146 = vand.u32 %v145, 4294901760
    %v147 = vsub.f32 %v145, %v146
    %v148 = vand.u32 %v147, 4294901760
    %149 = vmatmul.mubr.f32.gmra.mrb[0].mxu0 %v148
    %v150 = vpop.f32.mrb[0].mxu0
    %v151 = vadd.f32 0.0, %v150
    %v152 = vpop.f32.mrb[0].mxu0
    %153 = vdwg.mxu0
    %154 = vmatprep.subr.mxu0 0.0
    %v155 = vand.u32 %v47, 4294901760
    %v156 = vsub.f32 %v47, %v155
    %v157 = vand.u32 %v156, 4294901760
    %v158 = vsub.f32 %v156, %v157
    %v159 = vand.u32 %v158, 4294901760
    %160 = vmatpush1.msra.mxu0 %v159
    %161 = vmatprep.subr.mxu0 0.0
    %v162 = vand.u32 %v48, 4294901760
    %v163 = vsub.f32 %v48, %v162
    %v164 = vand.u32 %v163, 4294901760
    %v165 = vsub.f32 %v163, %v164
    %v166 = vand.u32 %v165, 4294901760
    %167 = vmatpush1.msra.mxu0 %v166
    %168 = vmatprep.subr.mxu0 0.0
    %v169 = vand.u32 %v49, 4294901760
    %v170 = vsub.f32 %v49, %v169
    %v171 = vand.u32 %v170, 4294901760
    %v172 = vsub.f32 %v170, %v171
    %v173 = vand.u32 %v172, 4294901760
    %174 = vmatpush1.msra.mxu0 %v173
    %175 = vmatprep.subr.mxu0 0.0
    %v176 = vand.u32 %v50, 4294901760
    %v177 = vsub.f32 %v50, %v176
    %v178 = vand.u32 %v177, 4294901760
    %v179 = vsub.f32 %v177, %v178
    %v180 = vand.u32 %v179, 4294901760
    %181 = vmatpush1.msra.mxu0 %v180
    %182 = vmatprep.subr.mxu0 0.0
    %v183 = vand.u32 %v51, 4294901760
    %v184 = vsub.f32 %v51, %v183
    %v185 = vand.u32 %v184, 4294901760
    %v186 = vsub.f32 %v184, %v185
    %v187 = vand.u32 %v186, 4294901760
    %188 = vmatpush1.msra.mxu0 %v187
    %189 = vmatprep.subr.mxu0 0.0
    %v190 = vand.u32 %v52, 4294901760
    %v191 = vsub.f32 %v52, %v190
    %v192 = vand.u32 %v191, 4294901760
    %v193 = vsub.f32 %v191, %v192
    %v194 = vand.u32 %v193, 4294901760
    %195 = vmatpush1.msra.mxu0 %v194
    %196 = vmatprep.subr.mxu0 0.0
    %v197 = vand.u32 %v53, 4294901760
    %v198 = vsub.f32 %v53, %v197
    %v199 = vand.u32 %v198, 4294901760
    %v200 = vsub.f32 %v198, %v199
    %v201 = vand.u32 %v200, 4294901760
    %202 = vmatpush1.msra.mxu0 %v201
    %203 = vmatprep.subr.mxu0 0.0
    %v204 = vand.u32 %v54, 4294901760
    %v205 = vsub.f32 %v54, %v204
    %v206 = vand.u32 %v205, 4294901760
    %v207 = vsub.f32 %v205, %v206
    %v208 = vand.u32 %v207, 4294901760
    %209 = vmatpush1.msra.mxu0 %v208
    %210 = vmatprep.subr.mxu0 0.0
    %v211 = vand.u32 %v55, 4294901760
    %v212 = vsub.f32 %v55, %v211
    %v213 = vand.u32 %v212, 4294901760
    %v214 = vsub.f32 %v212, %v213
    %v215 = vand.u32 %v214, 4294901760
    %216 = vmatpush1.msra.mxu0 %v215
    %217 = vmatprep.subr.mxu0 0.0
    %v218 = vand.u32 %v56, 4294901760
    %v219 = vsub.f32 %v56, %v218
    %v220 = vand.u32 %v219, 4294901760
    %v221 = vsub.f32 %v219, %v220
    %v222 = vand.u32 %v221, 4294901760
    %223 = vmatpush1.msra.mxu0 %v222
    %224 = vmatprep.subr.mxu0 0.0
    %v225 = vand.u32 %v57, 4294901760
    %v226 = vsub.f32 %v57, %v225
    %v227 = vand.u32 %v226, 4294901760
    %v228 = vsub.f32 %v226, %v227
    %v229 = vand.u32 %v228, 4294901760
    %230 = vmatpush1.msra.mxu0 %v229
    %231 = vmatprep.subr.mxu0 0.0
    %v232 = vand.u32 %v58, 4294901760
    %v233 = vsub.f32 %v58, %v232
    %v234 = vand.u32 %v233, 4294901760
    %v235 = vsub.f32 %v233, %v234
    %v236 = vand.u32 %v235, 4294901760
    %237 = vmatpush1.msra.mxu0 %v236
    %238 = vmatprep.subr.mxu0 0.0
    %v239 = vand.u32 %v59, 4294901760
    %v240 = vsub.f32 %v59, %v239
    %v241 = vand.u32 %v240, 4294901760
    %v242 = vsub.f32 %v240, %v241
    %v243 = vand.u32 %v242, 4294901760
    %244 = vmatpush1.msra.mxu0 %v243
    %245 = vmatprep.subr.mxu0 0.0
    %v246 = vand.u32 %v60, 4294901760
    %v247 = vsub.f32 %v60, %v246
    %v248 = vand.u32 %v247, 4294901760
    %v249 = vsub.f32 %v247, %v248
    %v250 = vand.u32 %v249, 4294901760
    %251 = vmatpush1.msra.mxu0 %v250
    %252 = vmatprep.subr.mxu0 0.0
    %v253 = vand.u32 %v61, 4294901760
    %v254 = vsub.f32 %v61, %v253
    %v255 = vand.u32 %v254, 4294901760
    %v256 = vsub.f32 %v254, %v255
    %v257 = vand.u32 %v256, 4294901760
    %258 = vmatpush1.msra.mxu0 %v257
    %259 = vmatprep.subr.mxu0 0.0
    %v260 = vand.u32 %v62, 4294901760
    %v261 = vsub.f32 %v62, %v260
    %v262 = vand.u32 %v261, 4294901760
    %v263 = vsub.f32 %v261, %v262
    %v264 = vand.u32 %v263, 4294901760
    %265 = vmatpush1.msra.mxu0 %v264
    %266 = vmatprep.subr.mxu0 0.0
    %267 = vmatpush1.msra.mxu0 0.0
    %268 = vmatprep.subr.mxu0 0.0
    %269 = vmatpush1.msra.mxu0 0.0
    %270 = vmatprep.subr.mxu0 0.0
    %271 = vmatpush1.msra.mxu0 0.0
    %272 = vmatprep.subr.mxu0 0.0
    %273 = vmatpush1.msra.mxu0 0.0
    %274 = vmatprep.subr.mxu0 0.0
    %275 = vmatpush1.msra.mxu0 0.0
    %276 = vmatprep.subr.mxu0 0.0
    %277 = vmatpush1.msra.mxu0 0.0
    %278 = vmatprep.subr.mxu0 0.0
    %279 = vmatpush1.msra.mxu0 0.0
    %280 = vmatprep.subr.mxu0 0.0
    %281 = vmatpush1.msra.mxu0 0.0
    %282 = vmatprep.subr.mxu0 0.0
    %283 = vmatpush1.msra.mxu0 0.0
    %284 = vmatprep.subr.mxu0 0.0
    %285 = vmatpush1.msra.mxu0 0.0
    %286 = vmatprep.subr.mxu0 0.0
    %287 = vmatpush1.msra.mxu0 0.0
    %288 = vmatprep.subr.mxu0 0.0
    %289 = vmatpush1.msra.mxu0 0.0
    %290 = vmatprep.subr.mxu0 0.0
    %291 = vmatpush1.msra.mxu0 0.0
    %292 = vmatprep.subr.mxu0 0.0
    %293 = vmatpush1.msra.mxu0 0.0
    %294 = vmatprep.subr.mxu0 0.0
    %295 = vmatpush1.msra.mxu0 0.0
    %296 = vmatprep.subr.mxu0 0.0
    %297 = vmatpush1.msra.mxu0 0.0
    %298 = vmatprep.mubr.f32.mxu0 0.0
    %v299 = vand.u32 %v46, 4294901760
    %300 = vmatmul.mubr.f32.gmra.mrb[0].mxu0 %v299
    %v301 = vpop.f32.mrb[0].mxu0
    %v302 = vadd.f32 %v151, %v301
    %v303 = vpop.f32.mrb[0].mxu0
    %304 = vdwg.mxu0
    %305 = vmatprep.subr.mxu0 0.0
    %v306 = vand.u32 %v47, 4294901760
    %v307 = vsub.f32 %v47, %v306
    %308 = vmatpush1.msra.mxu0 %v307
    %309 = vmatprep.subr.mxu0 0.0
    %v310 = vand.u32 %v48, 4294901760
    %v311 = vsub.f32 %v48, %v310
    %312 = vmatpush1.msra.mxu0 %v311
    %313 = vmatprep.subr.mxu0 0.0
    %v314 = vand.u32 %v49, 4294901760
    %v315 = vsub.f32 %v49, %v314
    %316 = vmatpush1.msra.mxu0 %v315
    %317 = vmatprep.subr.mxu0 0.0
    %v318 = vand.u32 %v50, 4294901760
    %v319 = vsub.f32 %v50, %v318
    %320 = vmatpush1.msra.mxu0 %v319
    %321 = vmatprep.subr.mxu0 0.0
    %v322 = vand.u32 %v51, 4294901760
    %v323 = vsub.f32 %v51, %v322
    %324 = vmatpush1.msra.mxu0 %v323
    %325 = vmatprep.subr.mxu0 0.0
    %v326 = vand.u32 %v52, 4294901760
    %v327 = vsub.f32 %v52, %v326
    %328 = vmatpush1.msra.mxu0 %v327
    %329 = vmatprep.subr.mxu0 0.0
    %v330 = vand.u32 %v53, 4294901760
    %v331 = vsub.f32 %v53, %v330
    %332 = vmatpush1.msra.mxu0 %v331
    %333 = vmatprep.subr.mxu0 0.0
    %v334 = vand.u32 %v54, 4294901760
    %v335 = vsub.f32 %v54, %v334
    %336 = vmatpush1.msra.mxu0 %v335
    %337 = vmatprep.subr.mxu0 0.0
    %v338 = vand.u32 %v55, 4294901760
    %v339 = vsub.f32 %v55, %v338
    %340 = vmatpush1.msra.mxu0 %v339
    %341 = vmatprep.subr.mxu0 0.0
    %v342 = vand.u32 %v56, 4294901760
    %v343 = vsub.f32 %v56, %v342
    %344 = vmatpush1.msra.mxu0 %v343
    %345 = vmatprep.subr.mxu0 0.0
    %v346 = vand.u32 %v57, 4294901760
    %v347 = vsub.f32 %v57, %v346
    %348 = vmatpush1.msra.mxu0 %v347
    %349 = vmatprep.subr.mxu0 0.0
    %v350 = vand.u32 %v58, 4294901760
    %v351 = vsub.f32 %v58, %v350
    %352 = vmatpush1.msra.mxu0 %v351
    %353 = vmatprep.subr.mxu0 0.0
    %v354 = vand.u32 %v59, 4294901760
    %v355 = vsub.f32 %v59, %v354
    %356 = vmatpush1.msra.mxu0 %v355
    %357 = vmatprep.subr.mxu0 0.0
    %v358 = vand.u32 %v60, 4294901760
    %v359 = vsub.f32 %v60, %v358
    %360 = vmatpush1.msra.mxu0 %v359
    %361 = vmatprep.subr.mxu0 0.0
    %v362 = vand.u32 %v61, 4294901760
    %v363 = vsub.f32 %v61, %v362
    %364 = vmatpush1.msra.mxu0 %v363
    %365 = vmatprep.subr.mxu0 0.0
    %v366 = vand.u32 %v62, 4294901760
    %v367 = vsub.f32 %v62, %v366
    %368 = vmatpush1.msra.mxu0 %v367
    %369 = vmatprep.subr.mxu0 0.0
    %370 = vmatpush1.msra.mxu0 0.0
    %371 = vmatprep.subr.mxu0 0.0
    %372 = vmatpush1.msra.mxu0 0.0
    %373 = vmatprep.subr.mxu0 0.0
    %374 = vmatpush1.msra.mxu0 0.0
    %375 = vmatprep.subr.mxu0 0.0
    %376 = vmatpush1.msra.mxu0 0.0
    %377 = vmatprep.subr.mxu0 0.0
    %378 = vmatpush1.msra.mxu0 0.0
    %379 = vmatprep.subr.mxu0 0.0
    %380 = vmatpush1.msra.mxu0 0.0
    %381 = vmatprep.subr.mxu0 0.0
    %382 = vmatpush1.msra.mxu0 0.0
    %383 = vmatprep.subr.mxu0 0.0
    %384 = vmatpush1.msra.mxu0 0.0
    %385 = vmatprep.subr.mxu0 0.0
    %386 = vmatpush1.msra.mxu0 0.0
    %387 = vmatprep.subr.mxu0 0.0
    %388 = vmatpush1.msra.mxu0 0.0
    %389 = vmatprep.subr.mxu0 0.0
    %390 = vmatpush1.msra.mxu0 0.0
    %391 = vmatprep.subr.mxu0 0.0
    %392 = vmatpush1.msra.mxu0 0.0
    %393 = vmatprep.subr.mxu0 0.0
    %394 = vmatpush1.msra.mxu0 0.0
    %395 = vmatprep.subr.mxu0 0.0
    %396 = vmatpush1.msra.mxu0 0.0
    %397 = vmatprep.subr.mxu0 0.0
    %398 = vmatpush1.msra.mxu0 0.0
    %399 = vmatprep.subr.mxu0 0.0
    %400 = vmatpush1.msra.mxu0 0.0
    %401 = vmatprep.mubr.f32.mxu0 0.0
    %v402 = vand.u32 %v46, 4294901760
    %v403 = vsub.f32 %v46, %v402
    %404 = vmatmul.mubr.f32.gmra.mrb[0].mxu0 %v403
    %v405 = vpop.f32.mrb[0].mxu0
    %v406 = vadd.f32 %v302, %v405
    %v407 = vpop.f32.mrb[0].mxu0
    %408 = vdwg.mxu0
    %409 = vmatprep.subr.mxu0 0.0
    %v410 = vand.u32 %v47, 4294901760
    %411 = vmatpush1.msra.mxu0 %v410
    %412 = vmatprep.subr.mxu0 0.0
    %v413 = vand.u32 %v48, 4294901760
    %414 = vmatpush1.msra.mxu0 %v413
    %415 = vmatprep.subr.mxu0 0.0
    %v416 = vand.u32 %v49, 4294901760
    %417 = vmatpush1.msra.mxu0 %v416
    %418 = vmatprep.subr.mxu0 0.0
    %v419 = vand.u32 %v50, 4294901760
    %420 = vmatpush1.msra.mxu0 %v419
    %421 = vmatprep.subr.mxu0 0.0
    %v422 = vand.u32 %v51, 4294901760
    %423 = vmatpush1.msra.mxu0 %v422
    %424 = vmatprep.subr.mxu0 0.0
    %v425 = vand.u32 %v52, 4294901760
    %426 = vmatpush1.msra.mxu0 %v425
    %427 = vmatprep.subr.mxu0 0.0
    %v428 = vand.u32 %v53, 4294901760
    %429 = vmatpush1.msra.mxu0 %v428
    %430 = vmatprep.subr.mxu0 0.0
    %v431 = vand.u32 %v54, 4294901760
    %432 = vmatpush1.msra.mxu0 %v431
    %433 = vmatprep.subr.mxu0 0.0
    %v434 = vand.u32 %v55, 4294901760
    %435 = vmatpush1.msra.mxu0 %v434
    %436 = vmatprep.subr.mxu0 0.0
    %v437 = vand.u32 %v56, 4294901760
    %438 = vmatpush1.msra.mxu0 %v437
    %439 = vmatprep.subr.mxu0 0.0
    %v440 = vand.u32 %v57, 4294901760
    %441 = vmatpush1.msra.mxu0 %v440
    %442 = vmatprep.subr.mxu0 0.0
    %v443 = vand.u32 %v58, 4294901760
    %444 = vmatpush1.msra.mxu0 %v443
    %445 = vmatprep.subr.mxu0 0.0
    %v446 = vand.u32 %v59, 4294901760
    %447 = vmatpush1.msra.mxu0 %v446
    %448 = vmatprep.subr.mxu0 0.0
    %v449 = vand.u32 %v60, 4294901760
    %450 = vmatpush1.msra.mxu0 %v449
    %451 = vmatprep.subr.mxu0 0.0
    %v452 = vand.u32 %v61, 4294901760
    %453 = vmatpush1.msra.mxu0 %v452
    %454 = vmatprep.subr.mxu0 0.0
    %v455 = vand.u32 %v62, 4294901760
    %456 = vmatpush1.msra.mxu0 %v455
    %457 = vmatprep.subr.mxu0 0.0
    %458 = vmatpush1.msra.mxu0 0.0
    %459 = vmatprep.subr.mxu0 0.0
    %460 = vmatpush1.msra.mxu0 0.0
    %461 = vmatprep.subr.mxu0 0.0
    %462 = vmatpush1.msra.mxu0 0.0
    %463 = vmatprep.subr.mxu0 0.0
    %464 = vmatpush1.msra.mxu0 0.0
    %465 = vmatprep.subr.mxu0 0.0
    %466 = vmatpush1.msra.mxu0 0.0
    %467 = vmatprep.subr.mxu0 0.0
    %468 = vmatpush1.msra.mxu0 0.0
    %469 = vmatprep.subr.mxu0 0.0
    %470 = vmatpush1.msra.mxu0 0.0
    %471 = vmatprep.subr.mxu0 0.0
    %472 = vmatpush1.msra.mxu0 0.0
    %473 = vmatprep.subr.mxu0 0.0
    %474 = vmatpush1.msra.mxu0 0.0
    %475 = vmatprep.subr.mxu0 0.0
    %476 = vmatpush1.msra.mxu0 0.0
    %477 = vmatprep.subr.mxu0 0.0
    %478 = vmatpush1.msra.mxu0 0.0
    %479 = vmatprep.subr.mxu0 0.0
    %480 = vmatpush1.msra.mxu0 0.0
    %481 = vmatprep.subr.mxu0 0.0
    %482 = vmatpush1.msra.mxu0 0.0
    %483 = vmatprep.subr.mxu0 0.0
    %484 = vmatpush1.msra.mxu0 0.0
    %485 = vmatprep.subr.mxu0 0.0
    %486 = vmatpush1.msra.mxu0 0.0
    %487 = vmatprep.subr.mxu0 0.0
    %488 = vmatpush1.msra.mxu0 0.0
    %489 = vmatprep.mubr.f32.mxu0 0.0
    %v490 = vand.u32 %v46, 4294901760
    %v491 = vsub.f32 %v46, %v490
    %v492 = vand.u32 %v491, 4294901760
    %493 = vmatmul.mubr.f32.gmra.mrb[0].mxu0 %v492
    %v494 = vpop.f32.mrb[0].mxu0
    %v495 = vadd.f32 %v406, %v494
    %v496 = vpop.f32.mrb[0].mxu0
    %497 = vdwg.mxu0
    %498 = vmatprep.subr.mxu0 0.0
    %v499 = vand.u32 %v47, 4294901760
    %v500 = vsub.f32 %v47, %v499
    %v501 = vand.u32 %v500, 4294901760
    %502 = vmatpush1.msra.mxu0 %v501
    %503 = vmatprep.subr.mxu0 0.0
    %v504 = vand.u32 %v48, 4294901760
    %v505 = vsub.f32 %v48, %v504
    %v506 = vand.u32 %v505, 4294901760
    %507 = vmatpush1.msra.mxu0 %v506
    %508 = vmatprep.subr.mxu0 0.0
    %v509 = vand.u32 %v49, 4294901760
    %v510 = vsub.f32 %v49, %v509
    %v511 = vand.u32 %v510, 4294901760
    %512 = vmatpush1.msra.mxu0 %v511
    %513 = vmatprep.subr.mxu0 0.0
    %v514 = vand.u32 %v50, 4294901760
    %v515 = vsub.f32 %v50, %v514
    %v516 = vand.u32 %v515, 4294901760
    %517 = vmatpush1.msra.mxu0 %v516
    %518 = vmatprep.subr.mxu0 0.0
    %v519 = vand.u32 %v51, 4294901760
    %v520 = vsub.f32 %v51, %v519
    %v521 = vand.u32 %v520, 4294901760
    %522 = vmatpush1.msra.mxu0 %v521
    %523 = vmatprep.subr.mxu0 0.0
    %v524 = vand.u32 %v52, 4294901760
    %v525 = vsub.f32 %v52, %v524
    %v526 = vand.u32 %v525, 4294901760
    %527 = vmatpush1.msra.mxu0 %v526
    %528 = vmatprep.subr.mxu0 0.0
    %v529 = vand.u32 %v53, 4294901760
    %v530 = vsub.f32 %v53, %v529
    %v531 = vand.u32 %v530, 4294901760
    %532 = vmatpush1.msra.mxu0 %v531
    %533 = vmatprep.subr.mxu0 0.0
    %v534 = vand.u32 %v54, 4294901760
    %v535 = vsub.f32 %v54, %v534
    %v536 = vand.u32 %v535, 4294901760
    %537 = vmatpush1.msra.mxu0 %v536
    %538 = vmatprep.subr.mxu0 0.0
    %v539 = vand.u32 %v55, 4294901760
    %v540 = vsub.f32 %v55, %v539
    %v541 = vand.u32 %v540, 4294901760
    %542 = vmatpush1.msra.mxu0 %v541
    %543 = vmatprep.subr.mxu0 0.0
    %v544 = vand.u32 %v56, 4294901760
    %v545 = vsub.f32 %v56, %v544
    %v546 = vand.u32 %v545, 4294901760
    %547 = vmatpush1.msra.mxu0 %v546
    %548 = vmatprep.subr.mxu0 0.0
    %v549 = vand.u32 %v57, 4294901760
    %v550 = vsub.f32 %v57, %v549
    %v551 = vand.u32 %v550, 4294901760
    %552 = vmatpush1.msra.mxu0 %v551
    %553 = vmatprep.subr.mxu0 0.0
    %v554 = vand.u32 %v58, 4294901760
    %v555 = vsub.f32 %v58, %v554
    %v556 = vand.u32 %v555, 4294901760
    %557 = vmatpush1.msra.mxu0 %v556
    %558 = vmatprep.subr.mxu0 0.0
    %v559 = vand.u32 %v59, 4294901760
    %v560 = vsub.f32 %v59, %v559
    %v561 = vand.u32 %v560, 4294901760
    %562 = vmatpush1.msra.mxu0 %v561
    %563 = vmatprep.subr.mxu0 0.0
    %v564 = vand.u32 %v60, 4294901760
    %v565 = vsub.f32 %v60, %v564
    %v566 = vand.u32 %v565, 4294901760
    %567 = vmatpush1.msra.mxu0 %v566
    %568 = vmatprep.subr.mxu0 0.0
    %v569 = vand.u32 %v61, 4294901760
    %v570 = vsub.f32 %v61, %v569
    %v571 = vand.u32 %v570, 4294901760
    %572 = vmatpush1.msra.mxu0 %v571
    %573 = vmatprep.subr.mxu0 0.0
    %v574 = vand.u32 %v62, 4294901760
    %v575 = vsub.f32 %v62, %v574
    %v576 = vand.u32 %v575, 4294901760
    %577 = vmatpush1.msra.mxu0 %v576
    %578 = vmatprep.subr.mxu0 0.0
    %579 = vmatpush1.msra.mxu0 0.0
    %580 = vmatprep.subr.mxu0 0.0
    %581 = vmatpush1.msra.mxu0 0.0
    %582 = vmatprep.subr.mxu0 0.0
    %583 = vmatpush1.msra.mxu0 0.0
    %584 = vmatprep.subr.mxu0 0.0
    %585 = vmatpush1.msra.mxu0 0.0
    %586 = vmatprep.subr.mxu0 0.0
    %587 = vmatpush1.msra.mxu0 0.0
    %588 = vmatprep.subr.mxu0 0.0
    %589 = vmatpush1.msra.mxu0 0.0
    %590 = vmatprep.subr.mxu0 0.0
    %591 = vmatpush1.msra.mxu0 0.0
    %592 = vmatprep.subr.mxu0 0.0
    %593 = vmatpush1.msra.mxu0 0.0
    %594 = vmatprep.subr.mxu0 0.0
    %595 = vmatpush1.msra.mxu0 0.0
    %596 = vmatprep.subr.mxu0 0.0
    %597 = vmatpush1.msra.mxu0 0.0
    %598 = vmatprep.subr.mxu0 0.0
    %599 = vmatpush1.msra.mxu0 0.0
    %600 = vmatprep.subr.mxu0 0.0
    %601 = vmatpush1.msra.mxu0 0.0
    %602 = vmatprep.subr.mxu0 0.0
    %603 = vmatpush1.msra.mxu0 0.0
    %604 = vmatprep.subr.mxu0 0.0
    %605 = vmatpush1.msra.mxu0 0.0
    %606 = vmatprep.subr.mxu0 0.0
    %607 = vmatpush1.msra.mxu0 0.0
    %608 = vmatprep.subr.mxu0 0.0
    %609 = vmatpush1.msra.mxu0 0.0
    %610 = vmatprep.mubr.f32.mxu0 0.0
    %v611 = vand.u32 %v46, 4294901760
    %612 = vmatmul.mubr.f32.gmra.mrb[0].mxu0 %v611
    %v613 = vpop.f32.mrb[0].mxu0
    %v614 = vadd.f32 %v495, %v613
    %v615 = vpop.f32.mrb[0].mxu0
    %616 = vdwg.mxu0
    %617 = vmatprep.subr.mxu0 0.0
    %v618 = vand.u32 %v47, 4294901760
    %619 = vmatpush1.msra.mxu0 %v618
    %620 = vmatprep.subr.mxu0 0.0
    %v621 = vand.u32 %v48, 4294901760
    %622 = vmatpush1.msra.mxu0 %v621
    %623 = vmatprep.subr.mxu0 0.0
    %v624 = vand.u32 %v49, 4294901760
    %625 = vmatpush1.msra.mxu0 %v624
    %626 = vmatprep.subr.mxu0 0.0
    %v627 = vand.u32 %v50, 4294901760
    %628 = vmatpush1.msra.mxu0 %v627
    %629 = vmatprep.subr.mxu0 0.0
    %v630 = vand.u32 %v51, 4294901760
    %631 = vmatpush1.msra.mxu0 %v630
    %632 = vmatprep.subr.mxu0 0.0
    %v633 = vand.u32 %v52, 4294901760
    %634 = vmatpush1.msra.mxu0 %v633
    %635 = vmatprep.subr.mxu0 0.0
    %v636 = vand.u32 %v53, 4294901760
    %637 = vmatpush1.msra.mxu0 %v636
    %638 = vmatprep.subr.mxu0 0.0
    %v639 = vand.u32 %v54, 4294901760
    %640 = vmatpush1.msra.mxu0 %v639
    %641 = vmatprep.subr.mxu0 0.0
    %v642 = vand.u32 %v55, 4294901760
    %643 = vmatpush1.msra.mxu0 %v642
    %644 = vmatprep.subr.mxu0 0.0
    %v645 = vand.u32 %v56, 4294901760
    %646 = vmatpush1.msra.mxu0 %v645
    %647 = vmatprep.subr.mxu0 0.0
    %v648 = vand.u32 %v57, 4294901760
    %649 = vmatpush1.msra.mxu0 %v648
    %650 = vmatprep.subr.mxu0 0.0
    %v651 = vand.u32 %v58, 4294901760
    %652 = vmatpush1.msra.mxu0 %v651
    %653 = vmatprep.subr.mxu0 0.0
    %v654 = vand.u32 %v59, 4294901760
    %655 = vmatpush1.msra.mxu0 %v654
    %656 = vmatprep.subr.mxu0 0.0
    %v657 = vand.u32 %v60, 4294901760
    %658 = vmatpush1.msra.mxu0 %v657
    %659 = vmatprep.subr.mxu0 0.0
    %v660 = vand.u32 %v61, 4294901760
    %661 = vmatpush1.msra.mxu0 %v660
    %662 = vmatprep.subr.mxu0 0.0
    %v663 = vand.u32 %v62, 4294901760
    %664 = vmatpush1.msra.mxu0 %v663
    %665 = vmatprep.subr.mxu0 0.0
    %666 = vmatpush1.msra.mxu0 0.0
    %667 = vmatprep.subr.mxu0 0.0
    %668 = vmatpush1.msra.mxu0 0.0
    %669 = vmatprep.subr.mxu0 0.0
    %670 = vmatpush1.msra.mxu0 0.0
    %671 = vmatprep.subr.mxu0 0.0
    %672 = vmatpush1.msra.mxu0 0.0
    %673 = vmatprep.subr.mxu0 0.0
    %674 = vmatpush1.msra.mxu0 0.0
    %675 = vmatprep.subr.mxu0 0.0
    %676 = vmatpush1.msra.mxu0 0.0
    %677 = vmatprep.subr.mxu0 0.0
    %678 = vmatpush1.msra.mxu0 0.0
    %679 = vmatprep.subr.mxu0 0.0
    %680 = vmatpush1.msra.mxu0 0.0
    %681 = vmatprep.subr.mxu0 0.0
    %682 = vmatpush1.msra.mxu0 0.0
    %683 = vmatprep.subr.mxu0 0.0
    %684 = vmatpush1.msra.mxu0 0.0
    %685 = vmatprep.subr.mxu0 0.0
    %686 = vmatpush1.msra.mxu0 0.0
    %687 = vmatprep.subr.mxu0 0.0
    %688 = vmatpush1.msra.mxu0 0.0
    %689 = vmatprep.subr.mxu0 0.0
    %690 = vmatpush1.msra.mxu0 0.0
    %691 = vmatprep.subr.mxu0 0.0
    %692 = vmatpush1.msra.mxu0 0.0
    %693 = vmatprep.subr.mxu0 0.0
    %694 = vmatpush1.msra.mxu0 0.0
    %695 = vmatprep.subr.mxu0 0.0
    %696 = vmatpush1.msra.mxu0 0.0
    %697 = vmatprep.mubr.f32.mxu0 0.0
    %v698 = vand.u32 %v46, 4294901760
    %699 = vmatmul.mubr.f32.gmra.mrb[0].mxu0 %v698
    %v700 = vpop.f32.mrb[0].mxu0
    %v701 = vadd.f32 %v614, %v700
    %v702 = vpop.f32.mrb[0].mxu0
    %703 = vdwg.mxu0
    %vm704 = vcmask 31744
    %v705 = vsel %vm704, %v701, -inf
    %v706 = vrot.slane %v705, 4
    %v707 = vmax.f32 %v705, %v706
    %v708 = vrot.slane %v707, 2
    %v709 = vmax.f32 %v707, %v708
    %v710 = vrot.slane %v709, 1
    %v711 = vmax.f32 %v709, %v710
    %v712 = vsub.f32 %v701, %v711
    %v713 = vmul.f32 %v712, 1.442695
    %v714 = vpow.pop %v713
    %v715 = vsel %vm704, %v714, 0.0
    %v716 = vrot.slane %v715, 4
    %v717 = vadd.f32 %v715, %v716
    %v718 = vrot.slane %v717, 2
    %v719 = vadd.f32 %v717, %v718
    %v720 = vrot.slane %v719, 1
    %v721 = vadd.f32 %v719, %v720
    %v722 = vld [vmem:[%s3] sm:$0xf]
    %v724 = vsel %vm704, %v714, 0
    %vm726 = vcmask 1043456
    %v728 = vsel %vm726, %v722, 0
    %730 = vmatprep.subr.mxu0 0.0
    %v731 = vand.u32 %v728, 4294901760
    %732 = vmatpush1.msra.mxu0 %v731
    %733 = vmatprep.subr.mxu0 0.0
    %734 = vmatpush1.msra.mxu0 0.0
    %735 = vmatprep.subr.mxu0 0.0
    %736 = vmatpush1.msra.mxu0 0.0
    %737 = vmatprep.subr.mxu0 0.0
    %738 = vmatpush1.msra.mxu0 0.0
    %739 = vmatprep.subr.mxu0 0.0
    %740 = vmatpush1.msra.mxu0 0.0
    %741 = vmatprep.subr.mxu0 0.0
    %742 = vmatpush1.msra.mxu0 0.0
    %743 = vmatprep.subr.mxu0 0.0
    %744 = vmatpush1.msra.mxu0 0.0
    %745 = vmatprep.subr.mxu0 0.0
    %746 = vmatpush1.msra.mxu0 0.0
    %747 = vmatprep.subr.mxu0 0.0
    %748 = vmatpush1.msra.mxu0 0.0
    %749 = vmatprep.subr.mxu0 0.0
    %750 = vmatpush1.msra.mxu0 0.0
    %751 = vmatprep.subr.mxu0 0.0
    %752 = vmatpush1.msra.mxu0 0.0
    %753 = vmatprep.subr.mxu0 0.0
    %754 = vmatpush1.msra.mxu0 0.0
    %755 = vmatprep.subr.mxu0 0.0
    %756 = vmatpush1.msra.mxu0 0.0
    %757 = vmatprep.subr.mxu0 0.0
    %758 = vmatpush1.msra.mxu0 0.0
    %759 = vmatprep.subr.mxu0 0.0
    %760 = vmatpush1.msra.mxu0 0.0
    %761 = vmatprep.subr.mxu0 0.0
    %762 = vmatpush1.msra.mxu0 0.0
    %763 = vmatprep.subr.mxu0 0.0
    %764 = vmatpush1.msra.mxu0 0.0
    %765 = vmatprep.subr.mxu0 0.0
    %766 = vmatpush1.msra.mxu0 0.0
    %767 = vmatprep.subr.mxu0 0.0
    %768 = vmatpush1.msra.mxu0 0.0
    %769 = vmatprep.subr.mxu0 0.0
    %770 = vmatpush1.msra.mxu0 0.0
    %771 = vmatprep.subr.mxu0 0.0
    %772 = vmatpush1.msra.mxu0 0.0
    %773 = vmatprep.subr.mxu0 0.0
    %774 = vmatpush1.msra.mxu0 0.0
    %775 = vmatprep.subr.mxu0 0.0
    %776 = vmatpush1.msra.mxu0 0.0
    %777 = vmatprep.subr.mxu0 0.0
    %778 = vmatpush1.msra.mxu0 0.0
    %779 = vmatprep.subr.mxu0 0.0
    %780 = vmatpush1.msra.mxu0 0.0
    %781 = vmatprep.subr.mxu0 0.0
    %782 = vmatpush1.msra.mxu0 0.0
    %783 = vmatprep.subr.mxu0 0.0
    %784 = vmatpush1.msra.mxu0 0.0
    %785 = vmatprep.subr.mxu0 0.0
    %786 = vmatpush1.msra.mxu0 0.0
    %787 = vmatprep.subr.mxu0 0.0
    %788 = vmatpush1.msra.mxu0 0.0
    %789 = vmatprep.subr.mxu0 0.0
    %790 = vmatpush1.msra.mxu0 0.0
    %791 = vmatprep.subr.mxu0 0.0
    %792 = vmatpush1.msra.mxu0 0.0
    %793 = vmatprep.subr.mxu0 0.0
    %794 = vmatpush1.msra.mxu0 0.0
    %795 = vmatprep.mubr.f32.mxu0 0.0
    %v796 = vand.u32 %v724, 4294901760
    %v797 = vsub.f32 %v724, %v796
    %v798 = vand.u32 %v797, 4294901760
    %v799 = vsub.f32 %v797, %v798
    %v800 = vand.u32 %v799, 4294901760
    %801 = vmatmul.mubr.f32.gmra.mrb[0].mxu0 %v800
    %v802 = vpop.f32.mrb[0].mxu0
    %v803 = vadd.f32 0.0, %v802
    %v804 = vpop.f32.mrb[0].mxu0
    %805 = vdwg.mxu0
    %806 = vmatprep.subr.mxu0 0.0
    %v807 = vand.u32 %v728, 4294901760
    %v808 = vsub.f32 %v728, %v807
    %v809 = vand.u32 %v808, 4294901760
    %v810 = vsub.f32 %v808, %v809
    %v811 = vand.u32 %v810, 4294901760
    %812 = vmatpush1.msra.mxu0 %v811
    %813 = vmatprep.subr.mxu0 0.0
    %814 = vmatpush1.msra.mxu0 0.0
    %815 = vmatprep.subr.mxu0 0.0
    %816 = vmatpush1.msra.mxu0 0.0
    %817 = vmatprep.subr.mxu0 0.0
    %818 = vmatpush1.msra.mxu0 0.0
    %819 = vmatprep.subr.mxu0 0.0
    %820 = vmatpush1.msra.mxu0 0.0
    %821 = vmatprep.subr.mxu0 0.0
    %822 = vmatpush1.msra.mxu0 0.0
    %823 = vmatprep.subr.mxu0 0.0
    %824 = vmatpush1.msra.mxu0 0.0
    %825 = vmatprep.subr.mxu0 0.0
    %826 = vmatpush1.msra.mxu0 0.0
    %827 = vmatprep.subr.mxu0 0.0
    %828 = vmatpush1.msra.mxu0 0.0
    %829 = vmatprep.subr.mxu0 0.0
    %830 = vmatpush1.msra.mxu0 0.0
    %831 = vmatprep.subr.mxu0 0.0
    %832 = vmatpush1.msra.mxu0 0.0
    %833 = vmatprep.subr.mxu0 0.0
    %834 = vmatpush1.msra.mxu0 0.0
    %835 = vmatprep.subr.mxu0 0.0
    %836 = vmatpush1.msra.mxu0 0.0
    %837 = vmatprep.subr.mxu0 0.0
    %838 = vmatpush1.msra.mxu0 0.0
    %839 = vmatprep.subr.mxu0 0.0
    %840 = vmatpush1.msra.mxu0 0.0
    %841 = vmatprep.subr.mxu0 0.0
    %842 = vmatpush1.msra.mxu0 0.0
    %843 = vmatprep.subr.mxu0 0.0
    %844 = vmatpush1.msra.mxu0 0.0
    %845 = vmatprep.subr.mxu0 0.0
    %846 = vmatpush1.msra.mxu0 0.0
    %847 = vmatprep.subr.mxu0 0.0
    %848 = vmatpush1.msra.mxu0 0.0
    %849 = vmatprep.subr.mxu0 0.0
    %850 = vmatpush1.msra.mxu0 0.0
    %851 = vmatprep.subr.mxu0 0.0
    %852 = vmatpush1.msra.mxu0 0.0
    %853 = vmatprep.subr.mxu0 0.0
    %854 = vmatpush1.msra.mxu0 0.0
    %855 = vmatprep.subr.mxu0 0.0
    %856 = vmatpush1.msra.mxu0 0.0
    %857 = vmatprep.subr.mxu0 0.0
    %858 = vmatpush1.msra.mxu0 0.0
    %859 = vmatprep.subr.mxu0 0.0
    %860 = vmatpush1.msra.mxu0 0.0
    %861 = vmatprep.subr.mxu0 0.0
    %862 = vmatpush1.msra.mxu0 0.0
    %863 = vmatprep.subr.mxu0 0.0
    %864 = vmatpush1.msra.mxu0 0.0
    %865 = vmatprep.subr.mxu0 0.0
    %866 = vmatpush1.msra.mxu0 0.0
    %867 = vmatprep.subr.mxu0 0.0
    %868 = vmatpush1.msra.mxu0 0.0
    %869 = vmatprep.subr.mxu0 0.0
    %870 = vmatpush1.msra.mxu0 0.0
    %871 = vmatprep.subr.mxu0 0.0
    %872 = vmatpush1.msra.mxu0 0.0
    %873 = vmatprep.subr.mxu0 0.0
    %874 = vmatpush1.msra.mxu0 0.0
    %875 = vmatprep.mubr.f32.mxu0 0.0
    %v876 = vand.u32 %v724, 4294901760
    %877 = vmatmul.mubr.f32.gmra.mrb[0].mxu0 %v876
    %v878 = vpop.f32.mrb[0].mxu0
    %v879 = vadd.f32 %v803, %v878
    %v880 = vpop.f32.mrb[0].mxu0
    %881 = vdwg.mxu0
    %882 = vmatprep.subr.mxu0 0.0
    %v883 = vand.u32 %v728, 4294901760
    %v884 = vsub.f32 %v728, %v883
    %885 = vmatpush1.msra.mxu0 %v884
    %886 = vmatprep.subr.mxu0 0.0
    %887 = vmatpush1.msra.mxu0 0.0
    %888 = vmatprep.subr.mxu0 0.0
    %889 = vmatpush1.msra.mxu0 0.0
    %890 = vmatprep.subr.mxu0 0.0
    %891 = vmatpush1.msra.mxu0 0.0
    %892 = vmatprep.subr.mxu0 0.0
    %893 = vmatpush1.msra.mxu0 0.0
    %894 = vmatprep.subr.mxu0 0.0
    %895 = vmatpush1.msra.mxu0 0.0
    %896 = vmatprep.subr.mxu0 0.0
    %897 = vmatpush1.msra.mxu0 0.0
    %898 = vmatprep.subr.mxu0 0.0
    %899 = vmatpush1.msra.mxu0 0.0
    %900 = vmatprep.subr.mxu0 0.0
    %901 = vmatpush1.msra.mxu0 0.0
    %902 = vmatprep.subr.mxu0 0.0
    %903 = vmatpush1.msra.mxu0 0.0
    %904 = vmatprep.subr.mxu0 0.0
    %905 = vmatpush1.msra.mxu0 0.0
    %906 = vmatprep.subr.mxu0 0.0
    %907 = vmatpush1.msra.mxu0 0.0
    %908 = vmatprep.subr.mxu0 0.0
    %909 = vmatpush1.msra.mxu0 0.0
    %910 = vmatprep.subr.mxu0 0.0
    %911 = vmatpush1.msra.mxu0 0.0
    %912 = vmatprep.subr.mxu0 0.0
    %913 = vmatpush1.msra.mxu0 0.0
    %914 = vmatprep.subr.mxu0 0.0
    %915 = vmatpush1.msra.mxu0 0.0
    %916 = vmatprep.subr.mxu0 0.0
    %917 = vmatpush1.msra.mxu0 0.0
    %918 = vmatprep.subr.mxu0 0.0
    %919 = vmatpush1.msra.mxu0 0.0
    %920 = vmatprep.subr.mxu0 0.0
    %921 = vmatpush1.msra.mxu0 0.0
    %922 = vmatprep.subr.mxu0 0.0
    %923 = vmatpush1.msra.mxu0 0.0
    %924 = vmatprep.subr.mxu0 0.0
    %925 = vmatpush1.msra.mxu0 0.0
    %926 = vmatprep.subr.mxu0 0.0
    %927 = vmatpush1.msra.mxu0 0.0
    %928 = vmatprep.subr.mxu0 0.0
    %929 = vmatpush1.msra.mxu0 0.0
    %930 = vmatprep.subr.mxu0 0.0
    %931 = vmatpush1.msra.mxu0 0.0
    %932 = vmatprep.subr.mxu0 0.0
    %933 = vmatpush1.msra.mxu0 0.0
    %934 = vmatprep.subr.mxu0 0.0
    %935 = vmatpush1.msra.mxu0 0.0
    %936 = vmatprep.subr.mxu0 0.0
    %937 = vmatpush1.msra.mxu0 0.0
    %938 = vmatprep.subr.mxu0 0.0
    %939 = vmatpush1.msra.mxu0 0.0
    %940 = vmatprep.subr.mxu0 0.0
    %941 = vmatpush1.msra.mxu0 0.0
    %942 = vmatprep.subr.mxu0 0.0
    %943 = vmatpush1.msra.mxu0 0.0
    %944 = vmatprep.subr.mxu0 0.0
    %945 = vmatpush1.msra.mxu0 0.0
    %946 = vmatprep.subr.mxu0 0.0
    %947 = vmatpush1.msra.mxu0 0.0
    %948 = vmatprep.mubr.f32.mxu0 0.0
    %v949 = vand.u32 %v724, 4294901760
    %v950 = vsub.f32 %v724, %v949
    %951 = vmatmul.mubr.f32.gmra.mrb[0].mxu0 %v950
    %v952 = vpop.f32.mrb[0].mxu0
    %v953 = vadd.f32 %v879, %v952
    %v954 = vpop.f32.mrb[0].mxu0
    %955 = vdwg.mxu0
    %956 = vmatprep.subr.mxu0 0.0
    %v957 = vand.u32 %v728, 4294901760
    %958 = vmatpush1.msra.mxu0 %v957
    %959 = vmatprep.subr.mxu0 0.0
    %960 = vmatpush1.msra.mxu0 0.0
    %961 = vmatprep.subr.mxu0 0.0
    %962 = vmatpush1.msra.mxu0 0.0
    %963 = vmatprep.subr.mxu0 0.0
    %964 = vmatpush1.msra.mxu0 0.0
    %965 = vmatprep.subr.mxu0 0.0
    %966 = vmatpush1.msra.mxu0 0.0
    %967 = vmatprep.subr.mxu0 0.0
    %968 = vmatpush1.msra.mxu0 0.0
    %969 = vmatprep.subr.mxu0 0.0
    %970 = vmatpush1.msra.mxu0 0.0
    %971 = vmatprep.subr.mxu0 0.0
    %972 = vmatpush1.msra.mxu0 0.0
    %973 = vmatprep.subr.mxu0 0.0
    %974 = vmatpush1.msra.mxu0 0.0
    %975 = vmatprep.subr.mxu0 0.0
    %976 = vmatpush1.msra.mxu0 0.0
    %977 = vmatprep.subr.mxu0 0.0
    %978 = vmatpush1.msra.mxu0 0.0
    %979 = vmatprep.subr.mxu0 0.0
    %980 = vmatpush1.msra.mxu0 0.0
    %981 = vmatprep.subr.mxu0 0.0
    %982 = vmatpush1.msra.mxu0 0.0
    %983 = vmatprep.subr.mxu0 0.0
    %984 = vmatpush1.msra.mxu0 0.0
    %985 = vmatprep.subr.mxu0 0.0
    %986 = vmatpush1.msra.mxu0 0.0
    %987 = vmatprep.subr.mxu0 0.0
    %988 = vmatpush1.msra.mxu0 0.0
    %989 = vmatprep.subr.mxu0 0.0
    %990 = vmatpush1.msra.mxu0 0.0
    %991 = vmatprep.subr.mxu0 0.0
    %992 = vmatpush1.msra.mxu0 0.0
    %993 = vmatprep.subr.mxu0 0.0
    %994 = vmatpush1.msra.mxu0 0.0
    %995 = vmatprep.subr.mxu0 0.0
    %996 = vmatpush1.msra.mxu0 0.0
    %997 = vmatprep.subr.mxu0 0.0
    %998 = vmatpush1.msra.mxu0 0.0
    %999 = vmatprep.subr.mxu0 0.0
    %1000 = vmatpush1.msra.mxu0 0.0
    %1001 = vmatprep.subr.mxu0 0.0
    %1002 = vmatpush1.msra.mxu0 0.0
    %1003 = vmatprep.subr.mxu0 0.0
    %1004 = vmatpush1.msra.mxu0 0.0
    %1005 = vmatprep.subr.mxu0 0.0
    %1006 = vmatpush1.msra.mxu0 0.0
    %1007 = vmatprep.subr.mxu0 0.0
    %1008 = vmatpush1.msra.mxu0 0.0
    %1009 = vmatprep.subr.mxu0 0.0
    %1010 = vmatpush1.msra.mxu0 0.0
    %1011 = vmatprep.subr.mxu0 0.0
    %1012 = vmatpush1.msra.mxu0 0.0
    %1013 = vmatprep.subr.mxu0 0.0
    %1014 = vmatpush1.msra.mxu0 0.0
    %1015 = vmatprep.subr.mxu0 0.0
    %1016 = vmatpush1.msra.mxu0 0.0
    %1017 = vmatprep.subr.mxu0 0.0
    %1018 = vmatpush1.msra.mxu0 0.0
    %1019 = vmatprep.subr.mxu0 0.0
    %1020 = vmatpush1.msra.mxu0 0.0
    %1021 = vmatprep.mubr.f32.mxu0 0.0
    %v1022 = vand.u32 %v724, 4294901760
    %v1023 = vsub.f32 %v724, %v1022
    %v1024 = vand.u32 %v1023, 4294901760
    %1025 = vmatmul.mubr.f32.gmra.mrb[0].mxu0 %v1024
    %v1026 = vpop.f32.mrb[0].mxu0
    %v1027 = vadd.f32 %v953, %v1026
    %v1028 = vpop.f32.mrb[0].mxu0
    %1029 = vdwg.mxu0
    %1030 = vmatprep.subr.mxu0 0.0
    %v1031 = vand.u32 %v728, 4294901760
    %v1032 = vsub.f32 %v728, %v1031
    %v1033 = vand.u32 %v1032, 4294901760
    %1034 = vmatpush1.msra.mxu0 %v1033
    %1035 = vmatprep.subr.mxu0 0.0
    %1036 = vmatpush1.msra.mxu0 0.0
    %1037 = vmatprep.subr.mxu0 0.0
    %1038 = vmatpush1.msra.mxu0 0.0
    %1039 = vmatprep.subr.mxu0 0.0
    %1040 = vmatpush1.msra.mxu0 0.0
    %1041 = vmatprep.subr.mxu0 0.0
    %1042 = vmatpush1.msra.mxu0 0.0
    %1043 = vmatprep.subr.mxu0 0.0
    %1044 = vmatpush1.msra.mxu0 0.0
    %1045 = vmatprep.subr.mxu0 0.0
    %1046 = vmatpush1.msra.mxu0 0.0
    %1047 = vmatprep.subr.mxu0 0.0
    %1048 = vmatpush1.msra.mxu0 0.0
    %1049 = vmatprep.subr.mxu0 0.0
    %1050 = vmatpush1.msra.mxu0 0.0
    %1051 = vmatprep.subr.mxu0 0.0
    %1052 = vmatpush1.msra.mxu0 0.0
    %1053 = vmatprep.subr.mxu0 0.0
    %1054 = vmatpush1.msra.mxu0 0.0
    %1055 = vmatprep.subr.mxu0 0.0
    %1056 = vmatpush1.msra.mxu0 0.0
    %1057 = vmatprep.subr.mxu0 0.0
    %1058 = vmatpush1.msra.mxu0 0.0
    %1059 = vmatprep.subr.mxu0 0.0
    %1060 = vmatpush1.msra.mxu0 0.0
    %1061 = vmatprep.subr.mxu0 0.0
    %1062 = vmatpush1.msra.mxu0 0.0
    %1063 = vmatprep.subr.mxu0 0.0
    %1064 = vmatpush1.msra.mxu0 0.0
    %1065 = vmatprep.subr.mxu0 0.0
    %1066 = vmatpush1.msra.mxu0 0.0
    %1067 = vmatprep.subr.mxu0 0.0
    %1068 = vmatpush1.msra.mxu0 0.0
    %1069 = vmatprep.subr.mxu0 0.0
    %1070 = vmatpush1.msra.mxu0 0.0
    %1071 = vmatprep.subr.mxu0 0.0
    %1072 = vmatpush1.msra.mxu0 0.0
    %1073 = vmatprep.subr.mxu0 0.0
    %1074 = vmatpush1.msra.mxu0 0.0
    %1075 = vmatprep.subr.mxu0 0.0
    %1076 = vmatpush1.msra.mxu0 0.0
    %1077 = vmatprep.subr.mxu0 0.0
    %1078 = vmatpush1.msra.mxu0 0.0
    %1079 = vmatprep.subr.mxu0 0.0
    %1080 = vmatpush1.msra.mxu0 0.0
    %1081 = vmatprep.subr.mxu0 0.0
    %1082 = vmatpush1.msra.mxu0 0.0
    %1083 = vmatprep.subr.mxu0 0.0
    %1084 = vmatpush1.msra.mxu0 0.0
    %1085 = vmatprep.subr.mxu0 0.0
    %1086 = vmatpush1.msra.mxu0 0.0
    %1087 = vmatprep.subr.mxu0 0.0
    %1088 = vmatpush1.msra.mxu0 0.0
    %1089 = vmatprep.subr.mxu0 0.0
    %1090 = vmatpush1.msra.mxu0 0.0
    %1091 = vmatprep.subr.mxu0 0.0
    %1092 = vmatpush1.msra.mxu0 0.0
    %1093 = vmatprep.subr.mxu0 0.0
    %1094 = vmatpush1.msra.mxu0 0.0
    %1095 = vmatprep.subr.mxu0 0.0
    %1096 = vmatpush1.msra.mxu0 0.0
    %1097 = vmatprep.mubr.f32.mxu0 0.0
    %v1098 = vand.u32 %v724, 4294901760
    %1099 = vmatmul.mubr.f32.gmra.mrb[0].mxu0 %v1098
    %v1100 = vpop.f32.mrb[0].mxu0
    %v1101 = vadd.f32 %v1027, %v1100
    %v1102 = vpop.f32.mrb[0].mxu0
    %1103 = vdwg.mxu0
    %1104 = vmatprep.subr.mxu0 0.0
    %v1105 = vand.u32 %v728, 4294901760
    %1106 = vmatpush1.msra.mxu0 %v1105
    %1107 = vmatprep.subr.mxu0 0.0
    %1108 = vmatpush1.msra.mxu0 0.0
    %1109 = vmatprep.subr.mxu0 0.0
    %1110 = vmatpush1.msra.mxu0 0.0
    %1111 = vmatprep.subr.mxu0 0.0
    %1112 = vmatpush1.msra.mxu0 0.0
    %1113 = vmatprep.subr.mxu0 0.0
    %1114 = vmatpush1.msra.mxu0 0.0
    %1115 = vmatprep.subr.mxu0 0.0
    %1116 = vmatpush1.msra.mxu0 0.0
    %1117 = vmatprep.subr.mxu0 0.0
    %1118 = vmatpush1.msra.mxu0 0.0
    %1119 = vmatprep.subr.mxu0 0.0
    %1120 = vmatpush1.msra.mxu0 0.0
    %1121 = vmatprep.subr.mxu0 0.0
    %1122 = vmatpush1.msra.mxu0 0.0
    %1123 = vmatprep.subr.mxu0 0.0
    %1124 = vmatpush1.msra.mxu0 0.0
    %1125 = vmatprep.subr.mxu0 0.0
    %1126 = vmatpush1.msra.mxu0 0.0
    %1127 = vmatprep.subr.mxu0 0.0
    %1128 = vmatpush1.msra.mxu0 0.0
    %1129 = vmatprep.subr.mxu0 0.0
    %1130 = vmatpush1.msra.mxu0 0.0
    %1131 = vmatprep.subr.mxu0 0.0
    %1132 = vmatpush1.msra.mxu0 0.0
    %1133 = vmatprep.subr.mxu0 0.0
    %1134 = vmatpush1.msra.mxu0 0.0
    %1135 = vmatprep.subr.mxu0 0.0
    %1136 = vmatpush1.msra.mxu0 0.0
    %1137 = vmatprep.subr.mxu0 0.0
    %1138 = vmatpush1.msra.mxu0 0.0
    %1139 = vmatprep.subr.mxu0 0.0
    %1140 = vmatpush1.msra.mxu0 0.0
    %1141 = vmatprep.subr.mxu0 0.0
    %1142 = vmatpush1.msra.mxu0 0.0
    %1143 = vmatprep.subr.mxu0 0.0
    %1144 = vmatpush1.msra.mxu0 0.0
    %1145 = vmatprep.subr.mxu0 0.0
    %1146 = vmatpush1.msra.mxu0 0.0
    %1147 = vmatprep.subr.mxu0 0.0
    %1148 = vmatpush1.msra.mxu0 0.0
    %1149 = vmatprep.subr.mxu0 0.0
    %1150 = vmatpush1.msra.mxu0 0.0
    %1151 = vmatprep.subr.mxu0 0.0
    %1152 = vmatpush1.msra.mxu0 0.0
    %1153 = vmatprep.subr.mxu0 0.0
    %1154 = vmatpush1.msra.mxu0 0.0
    %1155 = vmatprep.subr.mxu0 0.0
    %1156 = vmatpush1.msra.mxu0 0.0
    %1157 = vmatprep.subr.mxu0 0.0
    %1158 = vmatpush1.msra.mxu0 0.0
    %1159 = vmatprep.subr.mxu0 0.0
    %1160 = vmatpush1.msra.mxu0 0.0
    %1161 = vmatprep.subr.mxu0 0.0
    %1162 = vmatpush1.msra.mxu0 0.0
    %1163 = vmatprep.subr.mxu0 0.0
    %1164 = vmatpush1.msra.mxu0 0.0
    %1165 = vmatprep.subr.mxu0 0.0
    %1166 = vmatpush1.msra.mxu0 0.0
    %1167 = vmatprep.subr.mxu0 0.0
    %1168 = vmatpush1.msra.mxu0 0.0
    %1169 = vmatprep.mubr.f32.mxu0 0.0
    %v1170 = vand.u32 %v724, 4294901760
    %1171 = vmatmul.mubr.f32.gmra.mrb[0].mxu0 %v1170
    %v1172 = vpop.f32.mrb[0].mxu0
    %v1173 = vadd.f32 %v1101, %v1172
    %v1174 = vpop.f32.mrb[0].mxu0
    %1175 = vdwg.mxu0
    %v1177 = vsel %vm704, %v721, 0
    %1179 = vmatprep.subr.mxu0 0.0
    %v1180 = vand.u32 %v728, 4294901760
    %1181 = vmatpush1.msra.mxu0 %v1180
    %1182 = vmatprep.subr.mxu0 0.0
    %1183 = vmatpush1.msra.mxu0 0.0
    %1184 = vmatprep.subr.mxu0 0.0
    %1185 = vmatpush1.msra.mxu0 0.0
    %1186 = vmatprep.subr.mxu0 0.0
    %1187 = vmatpush1.msra.mxu0 0.0
    %1188 = vmatprep.subr.mxu0 0.0
    %1189 = vmatpush1.msra.mxu0 0.0
    %1190 = vmatprep.subr.mxu0 0.0
    %1191 = vmatpush1.msra.mxu0 0.0
    %1192 = vmatprep.subr.mxu0 0.0
    %1193 = vmatpush1.msra.mxu0 0.0
    %1194 = vmatprep.subr.mxu0 0.0
    %1195 = vmatpush1.msra.mxu0 0.0
    %1196 = vmatprep.subr.mxu0 0.0
    %1197 = vmatpush1.msra.mxu0 0.0
    %1198 = vmatprep.subr.mxu0 0.0
    %1199 = vmatpush1.msra.mxu0 0.0
    %1200 = vmatprep.subr.mxu0 0.0
    %1201 = vmatpush1.msra.mxu0 0.0
    %1202 = vmatprep.subr.mxu0 0.0
    %1203 = vmatpush1.msra.mxu0 0.0
    %1204 = vmatprep.subr.mxu0 0.0
    %1205 = vmatpush1.msra.mxu0 0.0
    %1206 = vmatprep.subr.mxu0 0.0
    %1207 = vmatpush1.msra.mxu0 0.0
    %1208 = vmatprep.subr.mxu0 0.0
    %1209 = vmatpush1.msra.mxu0 0.0
    %1210 = vmatprep.subr.mxu0 0.0
    %1211 = vmatpush1.msra.mxu0 0.0
    %1212 = vmatprep.subr.mxu0 0.0
    %1213 = vmatpush1.msra.mxu0 0.0
    %1214 = vmatprep.subr.mxu0 0.0
    %1215 = vmatpush1.msra.mxu0 0.0
    %1216 = vmatprep.subr.mxu0 0.0
    %1217 = vmatpush1.msra.mxu0 0.0
    %1218 = vmatprep.subr.mxu0 0.0
    %1219 = vmatpush1.msra.mxu0 0.0
    %1220 = vmatprep.subr.mxu0 0.0
    %1221 = vmatpush1.msra.mxu0 0.0
    %1222 = vmatprep.subr.mxu0 0.0
    %1223 = vmatpush1.msra.mxu0 0.0
    %1224 = vmatprep.subr.mxu0 0.0
    %1225 = vmatpush1.msra.mxu0 0.0
    %1226 = vmatprep.subr.mxu0 0.0
    %1227 = vmatpush1.msra.mxu0 0.0
    %1228 = vmatprep.subr.mxu0 0.0
    %1229 = vmatpush1.msra.mxu0 0.0
    %1230 = vmatprep.subr.mxu0 0.0
    %1231 = vmatpush1.msra.mxu0 0.0
    %1232 = vmatprep.subr.mxu0 0.0
    %1233 = vmatpush1.msra.mxu0 0.0
    %1234 = vmatprep.subr.mxu0 0.0
    %1235 = vmatpush1.msra.mxu0 0.0
    %1236 = vmatprep.subr.mxu0 0.0
    %1237 = vmatpush1.msra.mxu0 0.0
    %1238 = vmatprep.subr.mxu0 0.0
    %1239 = vmatpush1.msra.mxu0 0.0
    %1240 = vmatprep.subr.mxu0 0.0
    %1241 = vmatpush1.msra.mxu0 0.0
    %1242 = vmatprep.subr.mxu0 0.0
    %1243 = vmatpush1.msra.mxu0 0.0
    %1244 = vmatprep.mubr.f32.mxu0 0.0
    %v1245 = vand.u32 %v1177, 4294901760
    %v1246 = vsub.f32 %v1177, %v1245
    %v1247 = vand.u32 %v1246, 4294901760
    %v1248 = vsub.f32 %v1246, %v1247
    %v1249 = vand.u32 %v1248, 4294901760
    %1250 = vmatmul.mubr.f32.gmra.mrb[0].mxu0 %v1249
    %v1251 = vpop.f32.mrb[0].mxu0
    %v1252 = vadd.f32 0.0, %v1251
    %v1253 = vpop.f32.mrb[0].mxu0
    %1254 = vdwg.mxu0
    %1255 = vmatprep.subr.mxu0 0.0
    %v1256 = vand.u32 %v728, 4294901760
    %v1257 = vsub.f32 %v728, %v1256
    %v1258 = vand.u32 %v1257, 4294901760
    %v1259 = vsub.f32 %v1257, %v1258
    %v1260 = vand.u32 %v1259, 4294901760
    %1261 = vmatpush1.msra.mxu0 %v1260
    %1262 = vmatprep.subr.mxu0 0.0
    %1263 = vmatpush1.msra.mxu0 0.0
    %1264 = vmatprep.subr.mxu0 0.0
    %1265 = vmatpush1.msra.mxu0 0.0
    %1266 = vmatprep.subr.mxu0 0.0
    %1267 = vmatpush1.msra.mxu0 0.0
    %1268 = vmatprep.subr.mxu0 0.0
    %1269 = vmatpush1.msra.mxu0 0.0
    %1270 = vmatprep.subr.mxu0 0.0
    %1271 = vmatpush1.msra.mxu0 0.0
    %1272 = vmatprep.subr.mxu0 0.0
    %1273 = vmatpush1.msra.mxu0 0.0
    %1274 = vmatprep.subr.mxu0 0.0
    %1275 = vmatpush1.msra.mxu0 0.0
    %1276 = vmatprep.subr.mxu0 0.0
    %1277 = vmatpush1.msra.mxu0 0.0
    %1278 = vmatprep.subr.mxu0 0.0
    %1279 = vmatpush1.msra.mxu0 0.0
    %1280 = vmatprep.subr.mxu0 0.0
    %1281 = vmatpush1.msra.mxu0 0.0
    %1282 = vmatprep.subr.mxu0 0.0
    %1283 = vmatpush1.msra.mxu0 0.0
    %1284 = vmatprep.subr.mxu0 0.0
    %1285 = vmatpush1.msra.mxu0 0.0
    %1286 = vmatprep.subr.mxu0 0.0
    %1287 = vmatpush1.msra.mxu0 0.0
    %1288 = vmatprep.subr.mxu0 0.0
    %1289 = vmatpush1.msra.mxu0 0.0
    %1290 = vmatprep.subr.mxu0 0.0
    %1291 = vmatpush1.msra.mxu0 0.0
    %1292 = vmatprep.subr.mxu0 0.0
    %1293 = vmatpush1.msra.mxu0 0.0
    %1294 = vmatprep.subr.mxu0 0.0
    %1295 = vmatpush1.msra.mxu0 0.0
    %1296 = vmatprep.subr.mxu0 0.0
    %1297 = vmatpush1.msra.mxu0 0.0
    %1298 = vmatprep.subr.mxu0 0.0
    %1299 = vmatpush1.msra.mxu0 0.0
    %1300 = vmatprep.subr.mxu0 0.0
    %1301 = vmatpush1.msra.mxu0 0.0
    %1302 = vmatprep.subr.mxu0 0.0
    %1303 = vmatpush1.msra.mxu0 0.0
    %1304 = vmatprep.subr.mxu0 0.0
    %1305 = vmatpush1.msra.mxu0 0.0
    %1306 = vmatprep.subr.mxu0 0.0
    %1307 = vmatpush1.msra.mxu0 0.0
    %1308 = vmatprep.subr.mxu0 0.0
    %1309 = vmatpush1.msra.mxu0 0.0
    %1310 = vmatprep.subr.mxu0 0.0
    %1311 = vmatpush1.msra.mxu0 0.0
    %1312 = vmatprep.subr.mxu0 0.0
    %1313 = vmatpush1.msra.mxu0 0.0
    %1314 = vmatprep.subr.mxu0 0.0
    %1315 = vmatpush1.msra.mxu0 0.0
    %1316 = vmatprep.subr.mxu0 0.0
    %1317 = vmatpush1.msra.mxu0 0.0
    %1318 = vmatprep.subr.mxu0 0.0
    %1319 = vmatpush1.msra.mxu0 0.0
    %1320 = vmatprep.subr.mxu0 0.0
    %1321 = vmatpush1.msra.mxu0 0.0
    %1322 = vmatprep.subr.mxu0 0.0
    %1323 = vmatpush1.msra.mxu0 0.0
    %1324 = vmatprep.mubr.f32.mxu0 0.0
    %v1325 = vand.u32 %v1177, 4294901760
    %1326 = vmatmul.mubr.f32.gmra.mrb[0].mxu0 %v1325
    %v1327 = vpop.f32.mrb[0].mxu0
    %v1328 = vadd.f32 %v1252, %v1327
    %v1329 = vpop.f32.mrb[0].mxu0
    %1330 = vdwg.mxu0
    %1331 = vmatprep.subr.mxu0 0.0
    %v1332 = vand.u32 %v728, 4294901760
    %v1333 = vsub.f32 %v728, %v1332
    %1334 = vmatpush1.msra.mxu0 %v1333
    %1335 = vmatprep.subr.mxu0 0.0
    %1336 = vmatpush1.msra.mxu0 0.0
    %1337 = vmatprep.subr.mxu0 0.0
    %1338 = vmatpush1.msra.mxu0 0.0
    %1339 = vmatprep.subr.mxu0 0.0
    %1340 = vmatpush1.msra.mxu0 0.0
    %1341 = vmatprep.subr.mxu0 0.0
    %1342 = vmatpush1.msra.mxu0 0.0
    %1343 = vmatprep.subr.mxu0 0.0
    %1344 = vmatpush1.msra.mxu0 0.0
    %1345 = vmatprep.subr.mxu0 0.0
    %1346 = vmatpush1.msra.mxu0 0.0
    %1347 = vmatprep.subr.mxu0 0.0
    %1348 = vmatpush1.msra.mxu0 0.0
    %1349 = vmatprep.subr.mxu0 0.0
    %1350 = vmatpush1.msra.mxu0 0.0
    %1351 = vmatprep.subr.mxu0 0.0
    %1352 = vmatpush1.msra.mxu0 0.0
    %1353 = vmatprep.subr.mxu0 0.0
    %1354 = vmatpush1.msra.mxu0 0.0
    %1355 = vmatprep.subr.mxu0 0.0
    %1356 = vmatpush1.msra.mxu0 0.0
    %1357 = vmatprep.subr.mxu0 0.0
    %1358 = vmatpush1.msra.mxu0 0.0
    %1359 = vmatprep.subr.mxu0 0.0
    %1360 = vmatpush1.msra.mxu0 0.0
    %1361 = vmatprep.subr.mxu0 0.0
    %1362 = vmatpush1.msra.mxu0 0.0
    %1363 = vmatprep.subr.mxu0 0.0
    %1364 = vmatpush1.msra.mxu0 0.0
    %1365 = vmatprep.subr.mxu0 0.0
    %1366 = vmatpush1.msra.mxu0 0.0
    %1367 = vmatprep.subr.mxu0 0.0
    %1368 = vmatpush1.msra.mxu0 0.0
    %1369 = vmatprep.subr.mxu0 0.0
    %1370 = vmatpush1.msra.mxu0 0.0
    %1371 = vmatprep.subr.mxu0 0.0
    %1372 = vmatpush1.msra.mxu0 0.0
    %1373 = vmatprep.subr.mxu0 0.0
    %1374 = vmatpush1.msra.mxu0 0.0
    %1375 = vmatprep.subr.mxu0 0.0
    %1376 = vmatpush1.msra.mxu0 0.0
    %1377 = vmatprep.subr.mxu0 0.0
    %1378 = vmatpush1.msra.mxu0 0.0
    %1379 = vmatprep.subr.mxu0 0.0
    %1380 = vmatpush1.msra.mxu0 0.0
    %1381 = vmatprep.subr.mxu0 0.0
    %1382 = vmatpush1.msra.mxu0 0.0
    %1383 = vmatprep.subr.mxu0 0.0
    %1384 = vmatpush1.msra.mxu0 0.0
    %1385 = vmatprep.subr.mxu0 0.0
    %1386 = vmatpush1.msra.mxu0 0.0
    %1387 = vmatprep.subr.mxu0 0.0
    %1388 = vmatpush1.msra.mxu0 0.0
    %1389 = vmatprep.subr.mxu0 0.0
    %1390 = vmatpush1.msra.mxu0 0.0
    %1391 = vmatprep.subr.mxu0 0.0
    %1392 = vmatpush1.msra.mxu0 0.0
    %1393 = vmatprep.subr.mxu0 0.0
    %1394 = vmatpush1.msra.mxu0 0.0
    %1395 = vmatprep.subr.mxu0 0.0
    %1396 = vmatpush1.msra.mxu0 0.0
    %1397 = vmatprep.mubr.f32.mxu0 0.0
    %v1398 = vand.u32 %v1177, 4294901760
    %v1399 = vsub.f32 %v1177, %v1398
    %1400 = vmatmul.mubr.f32.gmra.mrb[0].mxu0 %v1399
    %v1401 = vpop.f32.mrb[0].mxu0
    %v1402 = vadd.f32 %v1328, %v1401
    %v1403 = vpop.f32.mrb[0].mxu0
    %1404 = vdwg.mxu0
    %1405 = vmatprep.subr.mxu0 0.0
    %v1406 = vand.u32 %v728, 4294901760
    %1407 = vmatpush1.msra.mxu0 %v1406
    %1408 = vmatprep.subr.mxu0 0.0
    %1409 = vmatpush1.msra.mxu0 0.0
    %1410 = vmatprep.subr.mxu0 0.0
    %1411 = vmatpush1.msra.mxu0 0.0
    %1412 = vmatprep.subr.mxu0 0.0
    %1413 = vmatpush1.msra.mxu0 0.0
    %1414 = vmatprep.subr.mxu0 0.0
    %1415 = vmatpush1.msra.mxu0 0.0
    %1416 = vmatprep.subr.mxu0 0.0
    %1417 = vmatpush1.msra.mxu0 0.0
    %1418 = vmatprep.subr.mxu0 0.0
    %1419 = vmatpush1.msra.mxu0 0.0
    %1420 = vmatprep.subr.mxu0 0.0
    %1421 = vmatpush1.msra.mxu0 0.0
    %1422 = vmatprep.subr.mxu0 0.0
    %1423 = vmatpush1.msra.mxu0 0.0
    %1424 = vmatprep.subr.mxu0 0.0
    %1425 = vmatpush1.msra.mxu0 0.0
    %1426 = vmatprep.subr.mxu0 0.0
    %1427 = vmatpush1.msra.mxu0 0.0
    %1428 = vmatprep.subr.mxu0 0.0
    %1429 = vmatpush1.msra.mxu0 0.0
    %1430 = vmatprep.subr.mxu0 0.0
    %1431 = vmatpush1.msra.mxu0 0.0
    %1432 = vmatprep.subr.mxu0 0.0
    %1433 = vmatpush1.msra.mxu0 0.0
    %1434 = vmatprep.subr.mxu0 0.0
    %1435 = vmatpush1.msra.mxu0 0.0
    %1436 = vmatprep.subr.mxu0 0.0
    %1437 = vmatpush1.msra.mxu0 0.0
    %1438 = vmatprep.subr.mxu0 0.0
    %1439 = vmatpush1.msra.mxu0 0.0
    %1440 = vmatprep.subr.mxu0 0.0
    %1441 = vmatpush1.msra.mxu0 0.0
    %1442 = vmatprep.subr.mxu0 0.0
    %1443 = vmatpush1.msra.mxu0 0.0
    %1444 = vmatprep.subr.mxu0 0.0
    %1445 = vmatpush1.msra.mxu0 0.0
    %1446 = vmatprep.subr.mxu0 0.0
    %1447 = vmatpush1.msra.mxu0 0.0
    %1448 = vmatprep.subr.mxu0 0.0
    %1449 = vmatpush1.msra.mxu0 0.0
    %1450 = vmatprep.subr.mxu0 0.0
    %1451 = vmatpush1.msra.mxu0 0.0
    %1452 = vmatprep.subr.mxu0 0.0
    %1453 = vmatpush1.msra.mxu0 0.0
    %1454 = vmatprep.subr.mxu0 0.0
    %1455 = vmatpush1.msra.mxu0 0.0
    %1456 = vmatprep.subr.mxu0 0.0
    %1457 = vmatpush1.msra.mxu0 0.0
    %1458 = vmatprep.subr.mxu0 0.0
    %1459 = vmatpush1.msra.mxu0 0.0
    %1460 = vmatprep.subr.mxu0 0.0
    %1461 = vmatpush1.msra.mxu0 0.0
    %1462 = vmatprep.subr.mxu0 0.0
    %1463 = vmatpush1.msra.mxu0 0.0
    %1464 = vmatprep.subr.mxu0 0.0
    %1465 = vmatpush1.msra.mxu0 0.0
    %1466 = vmatprep.subr.mxu0 0.0
    %1467 = vmatpush1.msra.mxu0 0.0
    %1468 = vmatprep.subr.mxu0 0.0
    %1469 = vmatpush1.msra.mxu0 0.0
    %1470 = vmatprep.mubr.f32.mxu0 0.0
    %v1471 = vand.u32 %v1177, 4294901760
    %v1472 = vsub.f32 %v1177, %v1471
    %v1473 = vand.u32 %v1472, 4294901760
    %1474 = vmatmul.mubr.f32.gmra.mrb[0].mxu0 %v1473
    %v1475 = vpop.f32.mrb[0].mxu0
    %v1476 = vadd.f32 %v1402, %v1475
    %v1477 = vpop.f32.mrb[0].mxu0
    %1478 = vdwg.mxu0
    %1479 = vmatprep.subr.mxu0 0.0
    %v1480 = vand.u32 %v728, 4294901760
    %v1481 = vsub.f32 %v728, %v1480
    %v1482 = vand.u32 %v1481, 4294901760
    %1483 = vmatpush1.msra.mxu0 %v1482
    %1484 = vmatprep.subr.mxu0 0.0
    %1485 = vmatpush1.msra.mxu0 0.0
    %1486 = vmatprep.subr.mxu0 0.0
    %1487 = vmatpush1.msra.mxu0 0.0
    %1488 = vmatprep.subr.mxu0 0.0
    %1489 = vmatpush1.msra.mxu0 0.0
    %1490 = vmatprep.subr.mxu0 0.0
    %1491 = vmatpush1.msra.mxu0 0.0
    %1492 = vmatprep.subr.mxu0 0.0
    %1493 = vmatpush1.msra.mxu0 0.0
    %1494 = vmatprep.subr.mxu0 0.0
    %1495 = vmatpush1.msra.mxu0 0.0
    %1496 = vmatprep.subr.mxu0 0.0
    %1497 = vmatpush1.msra.mxu0 0.0
    %1498 = vmatprep.subr.mxu0 0.0
    %1499 = vmatpush1.msra.mxu0 0.0
    %1500 = vmatprep.subr.mxu0 0.0
    %1501 = vmatpush1.msra.mxu0 0.0
    %1502 = vmatprep.subr.mxu0 0.0
    %1503 = vmatpush1.msra.mxu0 0.0
    %1504 = vmatprep.subr.mxu0 0.0
    %1505 = vmatpush1.msra.mxu0 0.0
    %1506 = vmatprep.subr.mxu0 0.0
    %1507 = vmatpush1.msra.mxu0 0.0
    %1508 = vmatprep.subr.mxu0 0.0
    %1509 = vmatpush1.msra.mxu0 0.0
    %1510 = vmatprep.subr.mxu0 0.0
    %1511 = vmatpush1.msra.mxu0 0.0
    %1512 = vmatprep.subr.mxu0 0.0
    %1513 = vmatpush1.msra.mxu0 0.0
    %1514 = vmatprep.subr.mxu0 0.0
    %1515 = vmatpush1.msra.mxu0 0.0
    %1516 = vmatprep.subr.mxu0 0.0
    %1517 = vmatpush1.msra.mxu0 0.0
    %1518 = vmatprep.subr.mxu0 0.0
    %1519 = vmatpush1.msra.mxu0 0.0
    %1520 = vmatprep.subr.mxu0 0.0
    %1521 = vmatpush1.msra.mxu0 0.0
    %1522 = vmatprep.subr.mxu0 0.0
    %1523 = vmatpush1.msra.mxu0 0.0
    %1524 = vmatprep.subr.mxu0 0.0
    %1525 = vmatpush1.msra.mxu0 0.0
    %1526 = vmatprep.subr.mxu0 0.0
    %1527 = vmatpush1.msra.mxu0 0.0
    %1528 = vmatprep.subr.mxu0 0.0
    %1529 = vmatpush1.msra.mxu0 0.0
    %1530 = vmatprep.subr.mxu0 0.0
    %1531 = vmatpush1.msra.mxu0 0.0
    %1532 = vmatprep.subr.mxu0 0.0
    %1533 = vmatpush1.msra.mxu0 0.0
    %1534 = vmatprep.subr.mxu0 0.0
    %1535 = vmatpush1.msra.mxu0 0.0
    %1536 = vmatprep.subr.mxu0 0.0
    %1537 = vmatpush1.msra.mxu0 0.0
    %1538 = vmatprep.subr.mxu0 0.0
    %1539 = vmatpush1.msra.mxu0 0.0
    %1540 = vmatprep.subr.mxu0 0.0
    %1541 = vmatpush1.msra.mxu0 0.0
    %1542 = vmatprep.subr.mxu0 0.0
    %1543 = vmatpush1.msra.mxu0 0.0
    %1544 = vmatprep.subr.mxu0 0.0
    %1545 = vmatpush1.msra.mxu0 0.0
    %1546 = vmatprep.mubr.f32.mxu0 0.0
    %v1547 = vand.u32 %v1177, 4294901760
    %1548 = vmatmul.mubr.f32.gmra.mrb[0].mxu0 %v1547
    %v1549 = vpop.f32.mrb[0].mxu0
    %v1550 = vadd.f32 %v1476, %v1549
    %v1551 = vpop.f32.mrb[0].mxu0
    %1552 = vdwg.mxu0
    %1553 = vmatprep.subr.mxu0 0.0
    %v1554 = vand.u32 %v728, 4294901760
    %1555 = vmatpush1.msra.mxu0 %v1554
    %1556 = vmatprep.subr.mxu0 0.0
    %1557 = vmatpush1.msra.mxu0 0.0
    %1558 = vmatprep.subr.mxu0 0.0
    %1559 = vmatpush1.msra.mxu0 0.0
    %1560 = vmatprep.subr.mxu0 0.0
    %1561 = vmatpush1.msra.mxu0 0.0
    %1562 = vmatprep.subr.mxu0 0.0
    %1563 = vmatpush1.msra.mxu0 0.0
    %1564 = vmatprep.subr.mxu0 0.0
    %1565 = vmatpush1.msra.mxu0 0.0
    %1566 = vmatprep.subr.mxu0 0.0
    %1567 = vmatpush1.msra.mxu0 0.0
    %1568 = vmatprep.subr.mxu0 0.0
    %1569 = vmatpush1.msra.mxu0 0.0
    %1570 = vmatprep.subr.mxu0 0.0
    %1571 = vmatpush1.msra.mxu0 0.0
    %1572 = vmatprep.subr.mxu0 0.0
    %1573 = vmatpush1.msra.mxu0 0.0
    %1574 = vmatprep.subr.mxu0 0.0
    %1575 = vmatpush1.msra.mxu0 0.0
    %1576 = vmatprep.subr.mxu0 0.0
    %1577 = vmatpush1.msra.mxu0 0.0
    %1578 = vmatprep.subr.mxu0 0.0
    %1579 = vmatpush1.msra.mxu0 0.0
    %1580 = vmatprep.subr.mxu0 0.0
    %1581 = vmatpush1.msra.mxu0 0.0
    %1582 = vmatprep.subr.mxu0 0.0
    %1583 = vmatpush1.msra.mxu0 0.0
    %1584 = vmatprep.subr.mxu0 0.0
    %1585 = vmatpush1.msra.mxu0 0.0
    %1586 = vmatprep.subr.mxu0 0.0
    %1587 = vmatpush1.msra.mxu0 0.0
    %1588 = vmatprep.subr.mxu0 0.0
    %1589 = vmatpush1.msra.mxu0 0.0
    %1590 = vmatprep.subr.mxu0 0.0
    %1591 = vmatpush1.msra.mxu0 0.0
    %1592 = vmatprep.subr.mxu0 0.0
    %1593 = vmatpush1.msra.mxu0 0.0
    %1594 = vmatprep.subr.mxu0 0.0
    %1595 = vmatpush1.msra.mxu0 0.0
    %1596 = vmatprep.subr.mxu0 0.0
    %1597 = vmatpush1.msra.mxu0 0.0
    %1598 = vmatprep.subr.mxu0 0.0
    %1599 = vmatpush1.msra.mxu0 0.0
    %1600 = vmatprep.subr.mxu0 0.0
    %1601 = vmatpush1.msra.mxu0 0.0
    %1602 = vmatprep.subr.mxu0 0.0
    %1603 = vmatpush1.msra.mxu0 0.0
    %1604 = vmatprep.subr.mxu0 0.0
    %1605 = vmatpush1.msra.mxu0 0.0
    %1606 = vmatprep.subr.mxu0 0.0
    %1607 = vmatpush1.msra.mxu0 0.0
    %1608 = vmatprep.subr.mxu0 0.0
    %1609 = vmatpush1.msra.mxu0 0.0
    %1610 = vmatprep.subr.mxu0 0.0
    %1611 = vmatpush1.msra.mxu0 0.0
    %1612 = vmatprep.subr.mxu0 0.0
    %1613 = vmatpush1.msra.mxu0 0.0
    %1614 = vmatprep.subr.mxu0 0.0
    %1615 = vmatpush1.msra.mxu0 0.0
    %1616 = vmatprep.subr.mxu0 0.0
    %1617 = vmatpush1.msra.mxu0 0.0
    %1618 = vmatprep.mubr.f32.mxu0 0.0
    %v1619 = vand.u32 %v1177, 4294901760
    %1620 = vmatmul.mubr.f32.gmra.mrb[0].mxu0 %v1619
    %v1621 = vpop.f32.mrb[0].mxu0
    %v1622 = vadd.f32 %v1550, %v1621
    %v1623 = vpop.f32.mrb[0].mxu0
    %1624 = vdwg.mxu0
    %v1625 = vmul.f32 %v1173, %v39
    %v1626 = vrot.slane %v1625, 4
    %v1627 = vadd.f32 %v1625, %v1626
    %v1628 = vrot.slane %v1627, 2
    %v1629 = vadd.f32 %v1627, %v1628
    %v1630 = vrot.slane %v1629, 1
    %v1631 = vadd.f32 %v1629, %v1630
    %v1632 = vrcp.pop %v1622
    %v1633 = vmul.f32 %v1631, %v1632
    %v1634 = vld [vmem:[%s4] sm:$0xff]
    %v1635 = vld [vmem:[%s4 + $0x8] sm:$0xff]
    %v1636 = vld [vmem:[%s4 + $0x10] sm:$0xff]
    %v1637 = vld [vmem:[%s4 + $0x18] sm:$0xff]
    %v1638 = vld [vmem:[%s4 + $0x20] sm:$0xff]
    %v1639 = vld [vmem:[%s4 + $0x28] sm:$0xff]
    %v1640 = vld [vmem:[%s4 + $0x30] sm:$0xff]
    %v1641 = vld [vmem:[%s4 + $0x38] sm:$0xff]
    %v1642 = vld [vmem:[%s4 + $0x40] sm:$0xff]
    %v1643 = vld [vmem:[%s4 + $0x48] sm:$0xff]
    %v1644 = vld [vmem:[%s4 + $0x50] sm:$0xff]
    %v1645 = vld [vmem:[%s4 + $0x58] sm:$0xff]
    %v1646 = vld [vmem:[%s4 + $0x60] sm:$0xff]
    %v1647 = vld [vmem:[%s4 + $0x68] sm:$0xff]
    %v1648 = vld [vmem:[%s4 + $0x70] sm:$0xff]
    %v1649 = vld [vmem:[%s4 + $0x78] sm:$0xff]
    %v1650 = vld [vmem:[#allocation2] sm:$0xff]
    %v1651 = vld [vmem:[#allocation2 + $0x8] sm:$0xff]
    %v1652 = vld [vmem:[#allocation2 + $0x10] sm:$0xff]
    %v1653 = vld [vmem:[#allocation2 + $0x18] sm:$0xff]
    %v1654 = vld [vmem:[#allocation2 + $0x20] sm:$0xff]
    %v1655 = vld [vmem:[#allocation2 + $0x28] sm:$0xff]
    %v1656 = vld [vmem:[#allocation2 + $0x30] sm:$0xff]
    %v1657 = vld [vmem:[#allocation2 + $0x38] sm:$0xff]
    %v1658 = vld [vmem:[#allocation2 + $0x40] sm:$0xff]
    %v1659 = vld [vmem:[#allocation2 + $0x48] sm:$0xff]
    %v1660 = vld [vmem:[#allocation2 + $0x50] sm:$0xff]
    %v1661 = vld [vmem:[#allocation2 + $0x58] sm:$0xff]
    %v1662 = vld [vmem:[#allocation2 + $0x60] sm:$0xff]
    %v1663 = vld [vmem:[#allocation2 + $0x68] sm:$0xff]
    %v1664 = vld [vmem:[#allocation2 + $0x70] sm:$0xff]
    %v1665 = vld [vmem:[#allocation2 + $0x78] sm:$0xff]
    %1666 = vmatprep.subr.mxu0 0.0
    %v1667 = vand.u32 %v1650, 4294901760
    %1668 = vmatpush1.msra.mxu0 %v1667
    %1669 = vmatprep.subr.mxu0 0.0
    %v1670 = vand.u32 %v1651, 4294901760
    %1671 = vmatpush1.msra.mxu0 %v1670
    %1672 = vmatprep.subr.mxu0 0.0
    %v1673 = vand.u32 %v1652, 4294901760
    %1674 = vmatpush1.msra.mxu0 %v1673
    %1675 = vmatprep.subr.mxu0 0.0
    %v1676 = vand.u32 %v1653, 4294901760
    %1677 = vmatpush1.msra.mxu0 %v1676
    %1678 = vmatprep.subr.mxu0 0.0
    %v1679 = vand.u32 %v1654, 4294901760
    %1680 = vmatpush1.msra.mxu0 %v1679
    %1681 = vmatprep.subr.mxu0 0.0
    %v1682 = vand.u32 %v1655, 4294901760
    %1683 = vmatpush1.msra.mxu0 %v1682
    %1684 = vmatprep.subr.mxu0 0.0
    %v1685 = vand.u32 %v1656, 4294901760
    %1686 = vmatpush1.msra.mxu0 %v1685
    %1687 = vmatprep.subr.mxu0 0.0
    %v1688 = vand.u32 %v1657, 4294901760
    %1689 = vmatpush1.msra.mxu0 %v1688
    %1690 = vmatprep.subr.mxu0 0.0
    %v1691 = vand.u32 %v1658, 4294901760
    %1692 = vmatpush1.msra.mxu0 %v1691
    %1693 = vmatprep.subr.mxu0 0.0
    %v1694 = vand.u32 %v1659, 4294901760
    %1695 = vmatpush1.msra.mxu0 %v1694
    %1696 = vmatprep.subr.mxu0 0.0
    %v1697 = vand.u32 %v1660, 4294901760
    %1698 = vmatpush1.msra.mxu0 %v1697
    %1699 = vmatprep.subr.mxu0 0.0
    %v1700 = vand.u32 %v1661, 4294901760
    %1701 = vmatpush1.msra.mxu0 %v1700
    %1702 = vmatprep.subr.mxu0 0.0
    %v1703 = vand.u32 %v1662, 4294901760
    %1704 = vmatpush1.msra.mxu0 %v1703
    %1705 = vmatprep.subr.mxu0 0.0
    %v1706 = vand.u32 %v1663, 4294901760
    %1707 = vmatpush1.msra.mxu0 %v1706
    %1708 = vmatprep.subr.mxu0 0.0
    %v1709 = vand.u32 %v1664, 4294901760
    %1710 = vmatpush1.msra.mxu0 %v1709
    %1711 = vmatprep.subr.mxu0 0.0
    %v1712 = vand.u32 %v1665, 4294901760
    %1713 = vmatpush1.msra.mxu0 %v1712
    %1714 = vmatprep.subr.mxu0 0.0
    %1715 = vmatpush1.msra.mxu0 0.0
    %1716 = vmatprep.subr.mxu0 0.0
    %1717 = vmatpush1.msra.mxu0 0.0
    %1718 = vmatprep.subr.mxu0 0.0
    %1719 = vmatpush1.msra.mxu0 0.0
    %1720 = vmatprep.subr.mxu0 0.0
    %1721 = vmatpush1.msra.mxu0 0.0
    %1722 = vmatprep.subr.mxu0 0.0
    %1723 = vmatpush1.msra.mxu0 0.0
    %1724 = vmatprep.subr.mxu0 0.0
    %1725 = vmatpush1.msra.mxu0 0.0
    %1726 = vmatprep.subr.mxu0 0.0
    %1727 = vmatpush1.msra.mxu0 0.0
    %1728 = vmatprep.subr.mxu0 0.0
    %1729 = vmatpush1.msra.mxu0 0.0
    %1730 = vmatprep.subr.mxu0 0.0
    %1731 = vmatpush1.msra.mxu0 0.0
    %1732 = vmatprep.subr.mxu0 0.0
    %1733 = vmatpush1.msra.mxu0 0.0
    %1734 = vmatprep.subr.mxu0 0.0
    %1735 = vmatpush1.msra.mxu0 0.0
    %1736 = vmatprep.subr.mxu0 0.0
    %1737 = vmatpush1.msra.mxu0 0.0
    %1738 = vmatprep.subr.mxu0 0.0
    %1739 = vmatpush1.msra.mxu0 0.0
    %1740 = vmatprep.subr.mxu0 0.0
    %1741 = vmatpush1.msra.mxu0 0.0
    %1742 = vmatprep.subr.mxu0 0.0
    %1743 = vmatpush1.msra.mxu0 0.0
    %1744 = vmatprep.subr.mxu0 0.0
    %1745 = vmatpush1.msra.mxu0 0.0
    %1746 = vmatprep.mubr.f32.mxu0 0.0
    %v1747 = vand.u32 %v1633, 4294901760
    %v1748 = vsub.f32 %v1633, %v1747
    %v1749 = vand.u32 %v1748, 4294901760
    %v1750 = vsub.f32 %v1748, %v1749
    %v1751 = vand.u32 %v1750, 4294901760
    %1752 = vmatmul.mubr.f32.gmra.mrb[0].mxu0 %v1751
    %v1753 = vpop.f32.mrb[0].mxu0
    %v1754 = vadd.f32 0.0, %v1753
    %v1755 = vpop.f32.mrb[0].mxu0
    %1756 = vdwg.mxu0
    %1757 = vmatprep.subr.mxu0 0.0
    %v1758 = vand.u32 %v1650, 4294901760
    %v1759 = vsub.f32 %v1650, %v1758
    %v1760 = vand.u32 %v1759, 4294901760
    %v1761 = vsub.f32 %v1759, %v1760
    %v1762 = vand.u32 %v1761, 4294901760
    %1763 = vmatpush1.msra.mxu0 %v1762
    %1764 = vmatprep.subr.mxu0 0.0
    %v1765 = vand.u32 %v1651, 4294901760
    %v1766 = vsub.f32 %v1651, %v1765
    %v1767 = vand.u32 %v1766, 4294901760
    %v1768 = vsub.f32 %v1766, %v1767
    %v1769 = vand.u32 %v1768, 4294901760
    %1770 = vmatpush1.msra.mxu0 %v1769
    %1771 = vmatprep.subr.mxu0 0.0
    %v1772 = vand.u32 %v1652, 4294901760
    %v1773 = vsub.f32 %v1652, %v1772
    %v1774 = vand.u32 %v1773, 4294901760
    %v1775 = vsub.f32 %v1773, %v1774
    %v1776 = vand.u32 %v1775, 4294901760
    %1777 = vmatpush1.msra.mxu0 %v1776
    %1778 = vmatprep.subr.mxu0 0.0
    %v1779 = vand.u32 %v1653, 4294901760
    %v1780 = vsub.f32 %v1653, %v1779
    %v1781 = vand.u32 %v1780, 4294901760
    %v1782 = vsub.f32 %v1780, %v1781
    %v1783 = vand.u32 %v1782, 4294901760
    %1784 = vmatpush1.msra.mxu0 %v1783
    %1785 = vmatprep.subr.mxu0 0.0
    %v1786 = vand.u32 %v1654, 4294901760
    %v1787 = vsub.f32 %v1654, %v1786
    %v1788 = vand.u32 %v1787, 4294901760
    %v1789 = vsub.f32 %v1787, %v1788
    %v1790 = vand.u32 %v1789, 4294901760
    %1791 = vmatpush1.msra.mxu0 %v1790
    %1792 = vmatprep.subr.mxu0 0.0
    %v1793 = vand.u32 %v1655, 4294901760
    %v1794 = vsub.f32 %v1655, %v1793
    %v1795 = vand.u32 %v1794, 4294901760
    %v1796 = vsub.f32 %v1794, %v1795
    %v1797 = vand.u32 %v1796, 4294901760
    %1798 = vmatpush1.msra.mxu0 %v1797
    %1799 = vmatprep.subr.mxu0 0.0
    %v1800 = vand.u32 %v1656, 4294901760
    %v1801 = vsub.f32 %v1656, %v1800
    %v1802 = vand.u32 %v1801, 4294901760
    %v1803 = vsub.f32 %v1801, %v1802
    %v1804 = vand.u32 %v1803, 4294901760
    %1805 = vmatpush1.msra.mxu0 %v1804
    %1806 = vmatprep.subr.mxu0 0.0
    %v1807 = vand.u32 %v1657, 4294901760
    %v1808 = vsub.f32 %v1657, %v1807
    %v1809 = vand.u32 %v1808, 4294901760
    %v1810 = vsub.f32 %v1808, %v1809
    %v1811 = vand.u32 %v1810, 4294901760
    %1812 = vmatpush1.msra.mxu0 %v1811
    %1813 = vmatprep.subr.mxu0 0.0
    %v1814 = vand.u32 %v1658, 4294901760
    %v1815 = vsub.f32 %v1658, %v1814
    %v1816 = vand.u32 %v1815, 4294901760
    %v1817 = vsub.f32 %v1815, %v1816
    %v1818 = vand.u32 %v1817, 4294901760
    %1819 = vmatpush1.msra.mxu0 %v1818
    %1820 = vmatprep.subr.mxu0 0.0
    %v1821 = vand.u32 %v1659, 4294901760
    %v1822 = vsub.f32 %v1659, %v1821
    %v1823 = vand.u32 %v1822, 4294901760
    %v1824 = vsub.f32 %v1822, %v1823
    %v1825 = vand.u32 %v1824, 4294901760
    %1826 = vmatpush1.msra.mxu0 %v1825
    %1827 = vmatprep.subr.mxu0 0.0
    %v1828 = vand.u32 %v1660, 4294901760
    %v1829 = vsub.f32 %v1660, %v1828
    %v1830 = vand.u32 %v1829, 4294901760
    %v1831 = vsub.f32 %v1829, %v1830
    %v1832 = vand.u32 %v1831, 4294901760
    %1833 = vmatpush1.msra.mxu0 %v1832
    %1834 = vmatprep.subr.mxu0 0.0
    %v1835 = vand.u32 %v1661, 4294901760
    %v1836 = vsub.f32 %v1661, %v1835
    %v1837 = vand.u32 %v1836, 4294901760
    %v1838 = vsub.f32 %v1836, %v1837
    %v1839 = vand.u32 %v1838, 4294901760
    %1840 = vmatpush1.msra.mxu0 %v1839
    %1841 = vmatprep.subr.mxu0 0.0
    %v1842 = vand.u32 %v1662, 4294901760
    %v1843 = vsub.f32 %v1662, %v1842
    %v1844 = vand.u32 %v1843, 4294901760
    %v1845 = vsub.f32 %v1843, %v1844
    %v1846 = vand.u32 %v1845, 4294901760
    %1847 = vmatpush1.msra.mxu0 %v1846
    %1848 = vmatprep.subr.mxu0 0.0
    %v1849 = vand.u32 %v1663, 4294901760
    %v1850 = vsub.f32 %v1663, %v1849
    %v1851 = vand.u32 %v1850, 4294901760
    %v1852 = vsub.f32 %v1850, %v1851
    %v1853 = vand.u32 %v1852, 4294901760
    %1854 = vmatpush1.msra.mxu0 %v1853
    %1855 = vmatprep.subr.mxu0 0.0
    %v1856 = vand.u32 %v1664, 4294901760
    %v1857 = vsub.f32 %v1664, %v1856
    %v1858 = vand.u32 %v1857, 4294901760
    %v1859 = vsub.f32 %v1857, %v1858
    %v1860 = vand.u32 %v1859, 4294901760
    %1861 = vmatpush1.msra.mxu0 %v1860
    %1862 = vmatprep.subr.mxu0 0.0
    %v1863 = vand.u32 %v1665, 4294901760
    %v1864 = vsub.f32 %v1665, %v1863
    %v1865 = vand.u32 %v1864, 4294901760
    %v1866 = vsub.f32 %v1864, %v1865
    %v1867 = vand.u32 %v1866, 4294901760
    %1868 = vmatpush1.msra.mxu0 %v1867
    %1869 = vmatprep.subr.mxu0 0.0
    %1870 = vmatpush1.msra.mxu0 0.0
    %1871 = vmatprep.subr.mxu0 0.0
    %1872 = vmatpush1.msra.mxu0 0.0
    %1873 = vmatprep.subr.mxu0 0.0
    %1874 = vmatpush1.msra.mxu0 0.0
    %1875 = vmatprep.subr.mxu0 0.0
    %1876 = vmatpush1.msra.mxu0 0.0
    %1877 = vmatprep.subr.mxu0 0.0
    %1878 = vmatpush1.msra.mxu0 0.0
    %1879 = vmatprep.subr.mxu0 0.0
    %1880 = vmatpush1.msra.mxu0 0.0
    %1881 = vmatprep.subr.mxu0 0.0
    %1882 = vmatpush1.msra.mxu0 0.0
    %1883 = vmatprep.subr.mxu0 0.0
    %1884 = vmatpush1.msra.mxu0 0.0
    %1885 = vmatprep.subr.mxu0 0.0
    %1886 = vmatpush1.msra.mxu0 0.0
    %1887 = vmatprep.subr.mxu0 0.0
    %1888 = vmatpush1.msra.mxu0 0.0
    %1889 = vmatprep.subr.mxu0 0.0
    %1890 = vmatpush1.msra.mxu0 0.0
    %1891 = vmatprep.subr.mxu0 0.0
    %1892 = vmatpush1.msra.mxu0 0.0
    %1893 = vmatprep.subr.mxu0 0.0
    %1894 = vmatpush1.msra.mxu0 0.0
    %1895 = vmatprep.subr.mxu0 0.0
    %1896 = vmatpush1.msra.mxu0 0.0
    %1897 = vmatprep.subr.mxu0 0.0
    %1898 = vmatpush1.msra.mxu0 0.0
    %1899 = vmatprep.subr.mxu0 0.0
    %1900 = vmatpush1.msra.mxu0 0.0
    %1901 = vmatprep.mubr.f32.mxu0 0.0
    %v1902 = vand.u32 %v1633, 4294901760
    %1903 = vmatmul.mubr.f32.gmra.mrb[0].mxu0 %v1902
    %v1904 = vpop.f32.mrb[0].mxu0
    %v1905 = vadd.f32 %v1754, %v1904
    %v1906 = vpop.f32.mrb[0].mxu0
    %1907 = vdwg.mxu0
    %1908 = vmatprep.subr.mxu0 0.0
    %v1909 = vand.u32 %v1650, 4294901760
    %v1910 = vsub.f32 %v1650, %v1909
    %1911 = vmatpush1.msra.mxu0 %v1910
    %1912 = vmatprep.subr.mxu0 0.0
    %v1913 = vand.u32 %v1651, 4294901760
    %v1914 = vsub.f32 %v1651, %v1913
    %1915 = vmatpush1.msra.mxu0 %v1914
    %1916 = vmatprep.subr.mxu0 0.0
    %v1917 = vand.u32 %v1652, 4294901760
    %v1918 = vsub.f32 %v1652, %v1917
    %1919 = vmatpush1.msra.mxu0 %v1918
    %1920 = vmatprep.subr.mxu0 0.0
    %v1921 = vand.u32 %v1653, 4294901760
    %v1922 = vsub.f32 %v1653, %v1921
    %1923 = vmatpush1.msra.mxu0 %v1922
    %1924 = vmatprep.subr.mxu0 0.0
    %v1925 = vand.u32 %v1654, 4294901760
    %v1926 = vsub.f32 %v1654, %v1925
    %1927 = vmatpush1.msra.mxu0 %v1926
    %1928 = vmatprep.subr.mxu0 0.0
    %v1929 = vand.u32 %v1655, 4294901760
    %v1930 = vsub.f32 %v1655, %v1929
    %1931 = vmatpush1.msra.mxu0 %v1930
    %1932 = vmatprep.subr.mxu0 0.0
    %v1933 = vand.u32 %v1656, 4294901760
    %v1934 = vsub.f32 %v1656, %v1933
    %1935 = vmatpush1.msra.mxu0 %v1934
    %1936 = vmatprep.subr.mxu0 0.0
    %v1937 = vand.u32 %v1657, 4294901760
    %v1938 = vsub.f32 %v1657, %v1937
    %1939 = vmatpush1.msra.mxu0 %v1938
    %1940 = vmatprep.subr.mxu0 0.0
    %v1941 = vand.u32 %v1658, 4294901760
    %v1942 = vsub.f32 %v1658, %v1941
    %1943 = vmatpush1.msra.mxu0 %v1942
    %1944 = vmatprep.subr.mxu0 0.0
    %v1945 = vand.u32 %v1659, 4294901760
    %v1946 = vsub.f32 %v1659, %v1945
    %1947 = vmatpush1.msra.mxu0 %v1946
    %1948 = vmatprep.subr.mxu0 0.0
    %v1949 = vand.u32 %v1660, 4294901760
    %v1950 = vsub.f32 %v1660, %v1949
    %1951 = vmatpush1.msra.mxu0 %v1950
    %1952 = vmatprep.subr.mxu0 0.0
    %v1953 = vand.u32 %v1661, 4294901760
    %v1954 = vsub.f32 %v1661, %v1953
    %1955 = vmatpush1.msra.mxu0 %v1954
    %1956 = vmatprep.subr.mxu0 0.0
    %v1957 = vand.u32 %v1662, 4294901760
    %v1958 = vsub.f32 %v1662, %v1957
    %1959 = vmatpush1.msra.mxu0 %v1958
    %1960 = vmatprep.subr.mxu0 0.0
    %v1961 = vand.u32 %v1663, 4294901760
    %v1962 = vsub.f32 %v1663, %v1961
    %1963 = vmatpush1.msra.mxu0 %v1962
    %1964 = vmatprep.subr.mxu0 0.0
    %v1965 = vand.u32 %v1664, 4294901760
    %v1966 = vsub.f32 %v1664, %v1965
    %1967 = vmatpush1.msra.mxu0 %v1966
    %1968 = vmatprep.subr.mxu0 0.0
    %v1969 = vand.u32 %v1665, 4294901760
    %v1970 = vsub.f32 %v1665, %v1969
    %1971 = vmatpush1.msra.mxu0 %v1970
    %1972 = vmatprep.subr.mxu0 0.0
    %1973 = vmatpush1.msra.mxu0 0.0
    %1974 = vmatprep.subr.mxu0 0.0
    %1975 = vmatpush1.msra.mxu0 0.0
    %1976 = vmatprep.subr.mxu0 0.0
    %1977 = vmatpush1.msra.mxu0 0.0
    %1978 = vmatprep.subr.mxu0 0.0
    %1979 = vmatpush1.msra.mxu0 0.0
    %1980 = vmatprep.subr.mxu0 0.0
    %1981 = vmatpush1.msra.mxu0 0.0
    %1982 = vmatprep.subr.mxu0 0.0
    %1983 = vmatpush1.msra.mxu0 0.0
    %1984 = vmatprep.subr.mxu0 0.0
    %1985 = vmatpush1.msra.mxu0 0.0
    %1986 = vmatprep.subr.mxu0 0.0
    %1987 = vmatpush1.msra.mxu0 0.0
    %1988 = vmatprep.subr.mxu0 0.0
    %1989 = vmatpush1.msra.mxu0 0.0
    %1990 = vmatprep.subr.mxu0 0.0
    %1991 = vmatpush1.msra.mxu0 0.0
    %1992 = vmatprep.subr.mxu0 0.0
    %1993 = vmatpush1.msra.mxu0 0.0
    %1994 = vmatprep.subr.mxu0 0.0
    %1995 = vmatpush1.msra.mxu0 0.0
    %1996 = vmatprep.subr.mxu0 0.0
    %1997 = vmatpush1.msra.mxu0 0.0
    %1998 = vmatprep.subr.mxu0 0.0
    %1999 = vmatpush1.msra.mxu0 0.0
    %2000 = vmatprep.subr.mxu0 0.0
    %2001 = vmatpush1.msra.mxu0 0.0
    %2002 = vmatprep.subr.mxu0 0.0
    %2003 = vmatpush1.msra.mxu0 0.0
    %2004 = vmatprep.mubr.f32.mxu0 0.0
    %v2005 = vand.u32 %v1633, 4294901760
    %v2006 = vsub.f32 %v1633, %v2005
    %2007 = vmatmul.mubr.f32.gmra.mrb[0].mxu0 %v2006
    %v2008 = vpop.f32.mrb[0].mxu0
    %v2009 = vadd.f32 %v1905, %v2008
    %v2010 = vpop.f32.mrb[0].mxu0
    %2011 = vdwg.mxu0
    %2012 = vmatprep.subr.mxu0 0.0
    %v2013 = vand.u32 %v1650, 4294901760
    %2014 = vmatpush1.msra.mxu0 %v2013
    %2015 = vmatprep.subr.mxu0 0.0
    %v2016 = vand.u32 %v1651, 4294901760
    %2017 = vmatpush1.msra.mxu0 %v2016
    %2018 = vmatprep.subr.mxu0 0.0
    %v2019 = vand.u32 %v1652, 4294901760
    %2020 = vmatpush1.msra.mxu0 %v2019
    %2021 = vmatprep.subr.mxu0 0.0
    %v2022 = vand.u32 %v1653, 4294901760
    %2023 = vmatpush1.msra.mxu0 %v2022
    %2024 = vmatprep.subr.mxu0 0.0
    %v2025 = vand.u32 %v1654, 4294901760
    %2026 = vmatpush1.msra.mxu0 %v2025
    %2027 = vmatprep.subr.mxu0 0.0
    %v2028 = vand.u32 %v1655, 4294901760
    %2029 = vmatpush1.msra.mxu0 %v2028
    %2030 = vmatprep.subr.mxu0 0.0
    %v2031 = vand.u32 %v1656, 4294901760
    %2032 = vmatpush1.msra.mxu0 %v2031
    %2033 = vmatprep.subr.mxu0 0.0
    %v2034 = vand.u32 %v1657, 4294901760
    %2035 = vmatpush1.msra.mxu0 %v2034
    %2036 = vmatprep.subr.mxu0 0.0
    %v2037 = vand.u32 %v1658, 4294901760
    %2038 = vmatpush1.msra.mxu0 %v2037
    %2039 = vmatprep.subr.mxu0 0.0
    %v2040 = vand.u32 %v1659, 4294901760
    %2041 = vmatpush1.msra.mxu0 %v2040
    %2042 = vmatprep.subr.mxu0 0.0
    %v2043 = vand.u32 %v1660, 4294901760
    %2044 = vmatpush1.msra.mxu0 %v2043
    %2045 = vmatprep.subr.mxu0 0.0
    %v2046 = vand.u32 %v1661, 4294901760
    %2047 = vmatpush1.msra.mxu0 %v2046
    %2048 = vmatprep.subr.mxu0 0.0
    %v2049 = vand.u32 %v1662, 4294901760
    %2050 = vmatpush1.msra.mxu0 %v2049
    %2051 = vmatprep.subr.mxu0 0.0
    %v2052 = vand.u32 %v1663, 4294901760
    %2053 = vmatpush1.msra.mxu0 %v2052
    %2054 = vmatprep.subr.mxu0 0.0
    %v2055 = vand.u32 %v1664, 4294901760
    %2056 = vmatpush1.msra.mxu0 %v2055
    %2057 = vmatprep.subr.mxu0 0.0
    %v2058 = vand.u32 %v1665, 4294901760
    %2059 = vmatpush1.msra.mxu0 %v2058
    %2060 = vmatprep.subr.mxu0 0.0
    %2061 = vmatpush1.msra.mxu0 0.0
    %2062 = vmatprep.subr.mxu0 0.0
    %2063 = vmatpush1.msra.mxu0 0.0
    %2064 = vmatprep.subr.mxu0 0.0
    %2065 = vmatpush1.msra.mxu0 0.0
    %2066 = vmatprep.subr.mxu0 0.0
    %2067 = vmatpush1.msra.mxu0 0.0
    %2068 = vmatprep.subr.mxu0 0.0
    %2069 = vmatpush1.msra.mxu0 0.0
    %2070 = vmatprep.subr.mxu0 0.0
    %2071 = vmatpush1.msra.mxu0 0.0
    %2072 = vmatprep.subr.mxu0 0.0
    %2073 = vmatpush1.msra.mxu0 0.0
    %2074 = vmatprep.subr.mxu0 0.0
    %2075 = vmatpush1.msra.mxu0 0.0
    %2076 = vmatprep.subr.mxu0 0.0
    %2077 = vmatpush1.msra.mxu0 0.0
    %2078 = vmatprep.subr.mxu0 0.0
    %2079 = vmatpush1.msra.mxu0 0.0
    %2080 = vmatprep.subr.mxu0 0.0
    %2081 = vmatpush1.msra.mxu0 0.0
    %2082 = vmatprep.subr.mxu0 0.0
    %2083 = vmatpush1.msra.mxu0 0.0
    %2084 = vmatprep.subr.mxu0 0.0
    %2085 = vmatpush1.msra.mxu0 0.0
    %2086 = vmatprep.subr.mxu0 0.0
    %2087 = vmatpush1.msra.mxu0 0.0
    %2088 = vmatprep.subr.mxu0 0.0
    %2089 = vmatpush1.msra.mxu0 0.0
    %2090 = vmatprep.subr.mxu0 0.0
    %2091 = vmatpush1.msra.mxu0 0.0
    %2092 = vmatprep.mubr.f32.mxu0 0.0
    %v2093 = vand.u32 %v1633, 4294901760
    %v2094 = vsub.f32 %v1633, %v2093
    %v2095 = vand.u32 %v2094, 4294901760
    %2096 = vmatmul.mubr.f32.gmra.mrb[0].mxu0 %v2095
    %v2097 = vpop.f32.mrb[0].mxu0
    %v2098 = vadd.f32 %v2009, %v2097
    %v2099 = vpop.f32.mrb[0].mxu0
    %2100 = vdwg.mxu0
    %2101 = vmatprep.subr.mxu0 0.0
    %v2102 = vand.u32 %v1650, 4294901760
    %v2103 = vsub.f32 %v1650, %v2102
    %v2104 = vand.u32 %v2103, 4294901760
    %2105 = vmatpush1.msra.mxu0 %v2104
    %2106 = vmatprep.subr.mxu0 0.0
    %v2107 = vand.u32 %v1651, 4294901760
    %v2108 = vsub.f32 %v1651, %v2107
    %v2109 = vand.u32 %v2108, 4294901760
    %2110 = vmatpush1.msra.mxu0 %v2109
    %2111 = vmatprep.subr.mxu0 0.0
    %v2112 = vand.u32 %v1652, 4294901760
    %v2113 = vsub.f32 %v1652, %v2112
    %v2114 = vand.u32 %v2113, 4294901760
    %2115 = vmatpush1.msra.mxu0 %v2114
    %2116 = vmatprep.subr.mxu0 0.0
    %v2117 = vand.u32 %v1653, 4294901760
    %v2118 = vsub.f32 %v1653, %v2117
    %v2119 = vand.u32 %v2118, 4294901760
    %2120 = vmatpush1.msra.mxu0 %v2119
    %2121 = vmatprep.subr.mxu0 0.0
    %v2122 = vand.u32 %v1654, 4294901760
    %v2123 = vsub.f32 %v1654, %v2122
    %v2124 = vand.u32 %v2123, 4294901760
    %2125 = vmatpush1.msra.mxu0 %v2124
    %2126 = vmatprep.subr.mxu0 0.0
    %v2127 = vand.u32 %v1655, 4294901760
    %v2128 = vsub.f32 %v1655, %v2127
    %v2129 = vand.u32 %v2128, 4294901760
    %2130 = vmatpush1.msra.mxu0 %v2129
    %2131 = vmatprep.subr.mxu0 0.0
    %v2132 = vand.u32 %v1656, 4294901760
    %v2133 = vsub.f32 %v1656, %v2132
    %v2134 = vand.u32 %v2133, 4294901760
    %2135 = vmatpush1.msra.mxu0 %v2134
    %2136 = vmatprep.subr.mxu0 0.0
    %v2137 = vand.u32 %v1657, 4294901760
    %v2138 = vsub.f32 %v1657, %v2137
    %v2139 = vand.u32 %v2138, 4294901760
    %2140 = vmatpush1.msra.mxu0 %v2139
    %2141 = vmatprep.subr.mxu0 0.0
    %v2142 = vand.u32 %v1658, 4294901760
    %v2143 = vsub.f32 %v1658, %v2142
    %v2144 = vand.u32 %v2143, 4294901760
    %2145 = vmatpush1.msra.mxu0 %v2144
    %2146 = vmatprep.subr.mxu0 0.0
    %v2147 = vand.u32 %v1659, 4294901760
    %v2148 = vsub.f32 %v1659, %v2147
    %v2149 = vand.u32 %v2148, 4294901760
    %2150 = vmatpush1.msra.mxu0 %v2149
    %2151 = vmatprep.subr.mxu0 0.0
    %v2152 = vand.u32 %v1660, 4294901760
    %v2153 = vsub.f32 %v1660, %v2152
    %v2154 = vand.u32 %v2153, 4294901760
    %2155 = vmatpush1.msra.mxu0 %v2154
    %2156 = vmatprep.subr.mxu0 0.0
    %v2157 = vand.u32 %v1661, 4294901760
    %v2158 = vsub.f32 %v1661, %v2157
    %v2159 = vand.u32 %v2158, 4294901760
    %2160 = vmatpush1.msra.mxu0 %v2159
    %2161 = vmatprep.subr.mxu0 0.0
    %v2162 = vand.u32 %v1662, 4294901760
    %v2163 = vsub.f32 %v1662, %v2162
    %v2164 = vand.u32 %v2163, 4294901760
    %2165 = vmatpush1.msra.mxu0 %v2164
    %2166 = vmatprep.subr.mxu0 0.0
    %v2167 = vand.u32 %v1663, 4294901760
    %v2168 = vsub.f32 %v1663, %v2167
    %v2169 = vand.u32 %v2168, 4294901760
    %2170 = vmatpush1.msra.mxu0 %v2169
    %2171 = vmatprep.subr.mxu0 0.0
    %v2172 = vand.u32 %v1664, 4294901760
    %v2173 = vsub.f32 %v1664, %v2172
    %v2174 = vand.u32 %v2173, 4294901760
    %2175 = vmatpush1.msra.mxu0 %v2174
    %2176 = vmatprep.subr.mxu0 0.0
    %v2177 = vand.u32 %v1665, 4294901760
    %v2178 = vsub.f32 %v1665, %v2177
    %v2179 = vand.u32 %v2178, 4294901760
    %2180 = vmatpush1.msra.mxu0 %v2179
    %2181 = vmatprep.subr.mxu0 0.0
    %2182 = vmatpush1.msra.mxu0 0.0
    %2183 = vmatprep.subr.mxu0 0.0
    %2184 = vmatpush1.msra.mxu0 0.0
    %2185 = vmatprep.subr.mxu0 0.0
    %2186 = vmatpush1.msra.mxu0 0.0
    %2187 = vmatprep.subr.mxu0 0.0
    %2188 = vmatpush1.msra.mxu0 0.0
    %2189 = vmatprep.subr.mxu0 0.0
    %2190 = vmatpush1.msra.mxu0 0.0
    %2191 = vmatprep.subr.mxu0 0.0
    %2192 = vmatpush1.msra.mxu0 0.0
    %2193 = vmatprep.subr.mxu0 0.0
    %2194 = vmatpush1.msra.mxu0 0.0
    %2195 = vmatprep.subr.mxu0 0.0
    %2196 = vmatpush1.msra.mxu0 0.0
    %2197 = vmatprep.subr.mxu0 0.0
    %2198 = vmatpush1.msra.mxu0 0.0
    %2199 = vmatprep.subr.mxu0 0.0
    %2200 = vmatpush1.msra.mxu0 0.0
    %2201 = vmatprep.subr.mxu0 0.0
    %2202 = vmatpush1.msra.mxu0 0.0
    %2203 = vmatprep.subr.mxu0 0.0
    %2204 = vmatpush1.msra.mxu0 0.0
    %2205 = vmatprep.subr.mxu0 0.0
    %2206 = vmatpush1.msra.mxu0 0.0
    %2207 = vmatprep.subr.mxu0 0.0
    %2208 = vmatpush1.msra.mxu0 0.0
    %2209 = vmatprep.subr.mxu0 0.0
    %2210 = vmatpush1.msra.mxu0 0.0
    %2211 = vmatprep.subr.mxu0 0.0
    %2212 = vmatpush1.msra.mxu0 0.0
    %2213 = vmatprep.mubr.f32.mxu0 0.0
    %v2214 = vand.u32 %v1633, 4294901760
    %2215 = vmatmul.mubr.f32.gmra.mrb[0].mxu0 %v2214
    %v2216 = vpop.f32.mrb[0].mxu0
    %v2217 = vadd.f32 %v2098, %v2216
    %v2218 = vpop.f32.mrb[0].mxu0
    %2219 = vdwg.mxu0
    %2220 = vmatprep.subr.mxu0 0.0
    %v2221 = vand.u32 %v1650, 4294901760
    %2222 = vmatpush1.msra.mxu0 %v2221
    %2223 = vmatprep.subr.mxu0 0.0
    %v2224 = vand.u32 %v1651, 4294901760
    %2225 = vmatpush1.msra.mxu0 %v2224
    %2226 = vmatprep.subr.mxu0 0.0
    %v2227 = vand.u32 %v1652, 4294901760
    %2228 = vmatpush1.msra.mxu0 %v2227
    %2229 = vmatprep.subr.mxu0 0.0
    %v2230 = vand.u32 %v1653, 4294901760
    %2231 = vmatpush1.msra.mxu0 %v2230
    %2232 = vmatprep.subr.mxu0 0.0
    %v2233 = vand.u32 %v1654, 4294901760
    %2234 = vmatpush1.msra.mxu0 %v2233
    %2235 = vmatprep.subr.mxu0 0.0
    %v2236 = vand.u32 %v1655, 4294901760
    %2237 = vmatpush1.msra.mxu0 %v2236
    %2238 = vmatprep.subr.mxu0 0.0
    %v2239 = vand.u32 %v1656, 4294901760
    %2240 = vmatpush1.msra.mxu0 %v2239
    %2241 = vmatprep.subr.mxu0 0.0
    %v2242 = vand.u32 %v1657, 4294901760
    %2243 = vmatpush1.msra.mxu0 %v2242
    %2244 = vmatprep.subr.mxu0 0.0
    %v2245 = vand.u32 %v1658, 4294901760
    %2246 = vmatpush1.msra.mxu0 %v2245
    %2247 = vmatprep.subr.mxu0 0.0
    %v2248 = vand.u32 %v1659, 4294901760
    %2249 = vmatpush1.msra.mxu0 %v2248
    %2250 = vmatprep.subr.mxu0 0.0
    %v2251 = vand.u32 %v1660, 4294901760
    %2252 = vmatpush1.msra.mxu0 %v2251
    %2253 = vmatprep.subr.mxu0 0.0
    %v2254 = vand.u32 %v1661, 4294901760
    %2255 = vmatpush1.msra.mxu0 %v2254
    %2256 = vmatprep.subr.mxu0 0.0
    %v2257 = vand.u32 %v1662, 4294901760
    %2258 = vmatpush1.msra.mxu0 %v2257
    %2259 = vmatprep.subr.mxu0 0.0
    %v2260 = vand.u32 %v1663, 4294901760
    %2261 = vmatpush1.msra.mxu0 %v2260
    %2262 = vmatprep.subr.mxu0 0.0
    %v2263 = vand.u32 %v1664, 4294901760
    %2264 = vmatpush1.msra.mxu0 %v2263
    %2265 = vmatprep.subr.mxu0 0.0
    %v2266 = vand.u32 %v1665, 4294901760
    %2267 = vmatpush1.msra.mxu0 %v2266
    %2268 = vmatprep.subr.mxu0 0.0
    %2269 = vmatpush1.msra.mxu0 0.0
    %2270 = vmatprep.subr.mxu0 0.0
    %2271 = vmatpush1.msra.mxu0 0.0
    %2272 = vmatprep.subr.mxu0 0.0
    %2273 = vmatpush1.msra.mxu0 0.0
    %2274 = vmatprep.subr.mxu0 0.0
    %2275 = vmatpush1.msra.mxu0 0.0
    %2276 = vmatprep.subr.mxu0 0.0
    %2277 = vmatpush1.msra.mxu0 0.0
    %2278 = vmatprep.subr.mxu0 0.0
    %2279 = vmatpush1.msra.mxu0 0.0
    %2280 = vmatprep.subr.mxu0 0.0
    %2281 = vmatpush1.msra.mxu0 0.0
    %2282 = vmatprep.subr.mxu0 0.0
    %2283 = vmatpush1.msra.mxu0 0.0
    %2284 = vmatprep.subr.mxu0 0.0
    %2285 = vmatpush1.msra.mxu0 0.0
    %2286 = vmatprep.subr.mxu0 0.0
    %2287 = vmatpush1.msra.mxu0 0.0
    %2288 = vmatprep.subr.mxu0 0.0
    %2289 = vmatpush1.msra.mxu0 0.0
    %2290 = vmatprep.subr.mxu0 0.0
    %2291 = vmatpush1.msra.mxu0 0.0
    %2292 = vmatprep.subr.mxu0 0.0
    %2293 = vmatpush1.msra.mxu0 0.0
    %2294 = vmatprep.subr.mxu0 0.0
    %2295 = vmatpush1.msra.mxu0 0.0
    %2296 = vmatprep.subr.mxu0 0.0
    %2297 = vmatpush1.msra.mxu0 0.0
    %2298 = vmatprep.subr.mxu0 0.0
    %2299 = vmatpush1.msra.mxu0 0.0
    %2300 = vmatprep.mubr.f32.mxu0 0.0
    %v2301 = vand.u32 %v1633, 4294901760
    %2302 = vmatmul.mubr.f32.gmra.mrb[0].mxu0 %v2301
    %v2303 = vpop.f32.mrb[0].mxu0
    %v2304 = vadd.f32 %v2217, %v2303
    %v2305 = vpop.f32.mrb[0].mxu0
    %2306 = vdwg.mxu0
    %2307 = vmatprep.subr.mxu0 0.0
    %v2308 = vand.u32 %v1634, 4294901760
    %2309 = vmatpush1.msra.mxu0 %v2308
    %2310 = vmatprep.subr.mxu0 0.0
    %v2311 = vand.u32 %v1635, 4294901760
    %2312 = vmatpush1.msra.mxu0 %v2311
    %2313 = vmatprep.subr.mxu0 0.0
    %v2314 = vand.u32 %v1636, 4294901760
    %2315 = vmatpush1.msra.mxu0 %v2314
    %2316 = vmatprep.subr.mxu0 0.0
    %v2317 = vand.u32 %v1637, 4294901760
    %2318 = vmatpush1.msra.mxu0 %v2317
    %2319 = vmatprep.subr.mxu0 0.0
    %v2320 = vand.u32 %v1638, 4294901760
    %2321 = vmatpush1.msra.mxu0 %v2320
    %2322 = vmatprep.subr.mxu0 0.0
    %v2323 = vand.u32 %v1639, 4294901760
    %2324 = vmatpush1.msra.mxu0 %v2323
    %2325 = vmatprep.subr.mxu0 0.0
    %v2326 = vand.u32 %v1640, 4294901760
    %2327 = vmatpush1.msra.mxu0 %v2326
    %2328 = vmatprep.subr.mxu0 0.0
    %v2329 = vand.u32 %v1641, 4294901760
    %2330 = vmatpush1.msra.mxu0 %v2329
    %2331 = vmatprep.subr.mxu0 0.0
    %v2332 = vand.u32 %v1642, 4294901760
    %2333 = vmatpush1.msra.mxu0 %v2332
    %2334 = vmatprep.subr.mxu0 0.0
    %v2335 = vand.u32 %v1643, 4294901760
    %2336 = vmatpush1.msra.mxu0 %v2335
    %2337 = vmatprep.subr.mxu0 0.0
    %v2338 = vand.u32 %v1644, 4294901760
    %2339 = vmatpush1.msra.mxu0 %v2338
    %2340 = vmatprep.subr.mxu0 0.0
    %v2341 = vand.u32 %v1645, 4294901760
    %2342 = vmatpush1.msra.mxu0 %v2341
    %2343 = vmatprep.subr.mxu0 0.0
    %v2344 = vand.u32 %v1646, 4294901760
    %2345 = vmatpush1.msra.mxu0 %v2344
    %2346 = vmatprep.subr.mxu0 0.0
    %v2347 = vand.u32 %v1647, 4294901760
    %2348 = vmatpush1.msra.mxu0 %v2347
    %2349 = vmatprep.subr.mxu0 0.0
    %v2350 = vand.u32 %v1648, 4294901760
    %2351 = vmatpush1.msra.mxu0 %v2350
    %2352 = vmatprep.subr.mxu0 0.0
    %v2353 = vand.u32 %v1649, 4294901760
    %2354 = vmatpush1.msra.mxu0 %v2353
    %2355 = vmatprep.subr.mxu0 0.0
    %2356 = vmatpush1.msra.mxu0 0.0
    %2357 = vmatprep.subr.mxu0 0.0
    %2358 = vmatpush1.msra.mxu0 0.0
    %2359 = vmatprep.subr.mxu0 0.0
    %2360 = vmatpush1.msra.mxu0 0.0
    %2361 = vmatprep.subr.mxu0 0.0
    %2362 = vmatpush1.msra.mxu0 0.0
    %2363 = vmatprep.subr.mxu0 0.0
    %2364 = vmatpush1.msra.mxu0 0.0
    %2365 = vmatprep.subr.mxu0 0.0
    %2366 = vmatpush1.msra.mxu0 0.0
    %2367 = vmatprep.subr.mxu0 0.0
    %2368 = vmatpush1.msra.mxu0 0.0
    %2369 = vmatprep.subr.mxu0 0.0
    %2370 = vmatpush1.msra.mxu0 0.0
    %2371 = vmatprep.subr.mxu0 0.0
    %2372 = vmatpush1.msra.mxu0 0.0
    %2373 = vmatprep.subr.mxu0 0.0
    %2374 = vmatpush1.msra.mxu0 0.0
    %2375 = vmatprep.subr.mxu0 0.0
    %2376 = vmatpush1.msra.mxu0 0.0
    %2377 = vmatprep.subr.mxu0 0.0
    %2378 = vmatpush1.msra.mxu0 0.0
    %2379 = vmatprep.subr.mxu0 0.0
    %2380 = vmatpush1.msra.mxu0 0.0
    %2381 = vmatprep.subr.mxu0 0.0
    %2382 = vmatpush1.msra.mxu0 0.0
    %2383 = vmatprep.subr.mxu0 0.0
    %2384 = vmatpush1.msra.mxu0 0.0
    %2385 = vmatprep.subr.mxu0 0.0
    %2386 = vmatpush1.msra.mxu0 0.0
    %2387 = vmatprep.mubr.f32.mxu0 0.0
    %v2388 = vand.u32 %v38, 4294901760
    %v2389 = vsub.f32 %v38, %v2388
    %v2390 = vand.u32 %v2389, 4294901760
    %v2391 = vsub.f32 %v2389, %v2390
    %v2392 = vand.u32 %v2391, 4294901760
    %2393 = vmatmul.mubr.f32.gmra.mrb[0].mxu0 %v2392
    %v2394 = vpop.f32.mrb[0].mxu0
    %v2395 = vadd.f32 %v2304, %v2394
    %v2396 = vpop.f32.mrb[0].mxu0
    %2397 = vdwg.mxu0
    %2398 = vmatprep.subr.mxu0 0.0
    %v2399 = vand.u32 %v1634, 4294901760
    %v2400 = vsub.f32 %v1634, %v2399
    %v2401 = vand.u32 %v2400, 4294901760
    %v2402 = vsub.f32 %v2400, %v2401
    %v2403 = vand.u32 %v2402, 4294901760
    %2404 = vmatpush1.msra.mxu0 %v2403
    %2405 = vmatprep.subr.mxu0 0.0
    %v2406 = vand.u32 %v1635, 4294901760
    %v2407 = vsub.f32 %v1635, %v2406
    %v2408 = vand.u32 %v2407, 4294901760
    %v2409 = vsub.f32 %v2407, %v2408
    %v2410 = vand.u32 %v2409, 4294901760
    %2411 = vmatpush1.msra.mxu0 %v2410
    %2412 = vmatprep.subr.mxu0 0.0
    %v2413 = vand.u32 %v1636, 4294901760
    %v2414 = vsub.f32 %v1636, %v2413
    %v2415 = vand.u32 %v2414, 4294901760
    %v2416 = vsub.f32 %v2414, %v2415
    %v2417 = vand.u32 %v2416, 4294901760
    %2418 = vmatpush1.msra.mxu0 %v2417
    %2419 = vmatprep.subr.mxu0 0.0
    %v2420 = vand.u32 %v1637, 4294901760
    %v2421 = vsub.f32 %v1637, %v2420
    %v2422 = vand.u32 %v2421, 4294901760
    %v2423 = vsub.f32 %v2421, %v2422
    %v2424 = vand.u32 %v2423, 4294901760
    %2425 = vmatpush1.msra.mxu0 %v2424
    %2426 = vmatprep.subr.mxu0 0.0
    %v2427 = vand.u32 %v1638, 4294901760
    %v2428 = vsub.f32 %v1638, %v2427
    %v2429 = vand.u32 %v2428, 4294901760
    %v2430 = vsub.f32 %v2428, %v2429
    %v2431 = vand.u32 %v2430, 4294901760
    %2432 = vmatpush1.msra.mxu0 %v2431
    %2433 = vmatprep.subr.mxu0 0.0
    %v2434 = vand.u32 %v1639, 4294901760
    %v2435 = vsub.f32 %v1639, %v2434
    %v2436 = vand.u32 %v2435, 4294901760
    %v2437 = vsub.f32 %v2435, %v2436
    %v2438 = vand.u32 %v2437, 4294901760
    %2439 = vmatpush1.msra.mxu0 %v2438
    %2440 = vmatprep.subr.mxu0 0.0
    %v2441 = vand.u32 %v1640, 4294901760
    %v2442 = vsub.f32 %v1640, %v2441
    %v2443 = vand.u32 %v2442, 4294901760
    %v2444 = vsub.f32 %v2442, %v2443
    %v2445 = vand.u32 %v2444, 4294901760
    %2446 = vmatpush1.msra.mxu0 %v2445
    %2447 = vmatprep.subr.mxu0 0.0
    %v2448 = vand.u32 %v1641, 4294901760
    %v2449 = vsub.f32 %v1641, %v2448
    %v2450 = vand.u32 %v2449, 4294901760
    %v2451 = vsub.f32 %v2449, %v2450
    %v2452 = vand.u32 %v2451, 4294901760
    %2453 = vmatpush1.msra.mxu0 %v2452
    %2454 = vmatprep.subr.mxu0 0.0
    %v2455 = vand.u32 %v1642, 4294901760
    %v2456 = vsub.f32 %v1642, %v2455
    %v2457 = vand.u32 %v2456, 4294901760
    %v2458 = vsub.f32 %v2456, %v2457
    %v2459 = vand.u32 %v2458, 4294901760
    %2460 = vmatpush1.msra.mxu0 %v2459
    %2461 = vmatprep.subr.mxu0 0.0
    %v2462 = vand.u32 %v1643, 4294901760
    %v2463 = vsub.f32 %v1643, %v2462
    %v2464 = vand.u32 %v2463, 4294901760
    %v2465 = vsub.f32 %v2463, %v2464
    %v2466 = vand.u32 %v2465, 4294901760
    %2467 = vmatpush1.msra.mxu0 %v2466
    %2468 = vmatprep.subr.mxu0 0.0
    %v2469 = vand.u32 %v1644, 4294901760
    %v2470 = vsub.f32 %v1644, %v2469
    %v2471 = vand.u32 %v2470, 4294901760
    %v2472 = vsub.f32 %v2470, %v2471
    %v2473 = vand.u32 %v2472, 4294901760
    %2474 = vmatpush1.msra.mxu0 %v2473
    %2475 = vmatprep.subr.mxu0 0.0
    %v2476 = vand.u32 %v1645, 4294901760
    %v2477 = vsub.f32 %v1645, %v2476
    %v2478 = vand.u32 %v2477, 4294901760
    %v2479 = vsub.f32 %v2477, %v2478
    %v2480 = vand.u32 %v2479, 4294901760
    %2481 = vmatpush1.msra.mxu0 %v2480
    %2482 = vmatprep.subr.mxu0 0.0
    %v2483 = vand.u32 %v1646, 4294901760
    %v2484 = vsub.f32 %v1646, %v2483
    %v2485 = vand.u32 %v2484, 4294901760
    %v2486 = vsub.f32 %v2484, %v2485
    %v2487 = vand.u32 %v2486, 4294901760
    %2488 = vmatpush1.msra.mxu0 %v2487
    %2489 = vmatprep.subr.mxu0 0.0
    %v2490 = vand.u32 %v1647, 4294901760
    %v2491 = vsub.f32 %v1647, %v2490
    %v2492 = vand.u32 %v2491, 4294901760
    %v2493 = vsub.f32 %v2491, %v2492
    %v2494 = vand.u32 %v2493, 4294901760
    %2495 = vmatpush1.msra.mxu0 %v2494
    %2496 = vmatprep.subr.mxu0 0.0
    %v2497 = vand.u32 %v1648, 4294901760
    %v2498 = vsub.f32 %v1648, %v2497
    %v2499 = vand.u32 %v2498, 4294901760
    %v2500 = vsub.f32 %v2498, %v2499
    %v2501 = vand.u32 %v2500, 4294901760
    %2502 = vmatpush1.msra.mxu0 %v2501
    %2503 = vmatprep.subr.mxu0 0.0
    %v2504 = vand.u32 %v1649, 4294901760
    %v2505 = vsub.f32 %v1649, %v2504
    %v2506 = vand.u32 %v2505, 4294901760
    %v2507 = vsub.f32 %v2505, %v2506
    %v2508 = vand.u32 %v2507, 4294901760
    %2509 = vmatpush1.msra.mxu0 %v2508
    %2510 = vmatprep.subr.mxu0 0.0
    %2511 = vmatpush1.msra.mxu0 0.0
    %2512 = vmatprep.subr.mxu0 0.0
    %2513 = vmatpush1.msra.mxu0 0.0
    %2514 = vmatprep.subr.mxu0 0.0
    %2515 = vmatpush1.msra.mxu0 0.0
    %2516 = vmatprep.subr.mxu0 0.0
    %2517 = vmatpush1.msra.mxu0 0.0
    %2518 = vmatprep.subr.mxu0 0.0
    %2519 = vmatpush1.msra.mxu0 0.0
    %2520 = vmatprep.subr.mxu0 0.0
    %2521 = vmatpush1.msra.mxu0 0.0
    %2522 = vmatprep.subr.mxu0 0.0
    %2523 = vmatpush1.msra.mxu0 0.0
    %2524 = vmatprep.subr.mxu0 0.0
    %2525 = vmatpush1.msra.mxu0 0.0
    %2526 = vmatprep.subr.mxu0 0.0
    %2527 = vmatpush1.msra.mxu0 0.0
    %2528 = vmatprep.subr.mxu0 0.0
    %2529 = vmatpush1.msra.mxu0 0.0
    %2530 = vmatprep.subr.mxu0 0.0
    %2531 = vmatpush1.msra.mxu0 0.0
    %2532 = vmatprep.subr.mxu0 0.0
    %2533 = vmatpush1.msra.mxu0 0.0
    %2534 = vmatprep.subr.mxu0 0.0
    %2535 = vmatpush1.msra.mxu0 0.0
    %2536 = vmatprep.subr.mxu0 0.0
    %2537 = vmatpush1.msra.mxu0 0.0
    %2538 = vmatprep.subr.mxu0 0.0
    %2539 = vmatpush1.msra.mxu0 0.0
    %2540 = vmatprep.subr.mxu0 0.0
    %2541 = vmatpush1.msra.mxu0 0.0
    %2542 = vmatprep.mubr.f32.mxu0 0.0
    %v2543 = vand.u32 %v38, 4294901760
    %2544 = vmatmul.mubr.f32.gmra.mrb[0].mxu0 %v2543
    %v2545 = vpop.f32.mrb[0].mxu0
    %v2546 = vadd.f32 %v2395, %v2545
    %v2547 = vpop.f32.mrb[0].mxu0
    %2548 = vdwg.mxu0
    %2549 = vmatprep.subr.mxu0 0.0
    %v2550 = vand.u32 %v1634, 4294901760
    %v2551 = vsub.f32 %v1634, %v2550
    %2552 = vmatpush1.msra.mxu0 %v2551
    %2553 = vmatprep.subr.mxu0 0.0
    %v2554 = vand.u32 %v1635, 4294901760
    %v2555 = vsub.f32 %v1635, %v2554
    %2556 = vmatpush1.msra.mxu0 %v2555
    %2557 = vmatprep.subr.mxu0 0.0
    %v2558 = vand.u32 %v1636, 4294901760
    %v2559 = vsub.f32 %v1636, %v2558
    %2560 = vmatpush1.msra.mxu0 %v2559
    %2561 = vmatprep.subr.mxu0 0.0
    %v2562 = vand.u32 %v1637, 4294901760
    %v2563 = vsub.f32 %v1637, %v2562
    %2564 = vmatpush1.msra.mxu0 %v2563
    %2565 = vmatprep.subr.mxu0 0.0
    %v2566 = vand.u32 %v1638, 4294901760
    %v2567 = vsub.f32 %v1638, %v2566
    %2568 = vmatpush1.msra.mxu0 %v2567
    %2569 = vmatprep.subr.mxu0 0.0
    %v2570 = vand.u32 %v1639, 4294901760
    %v2571 = vsub.f32 %v1639, %v2570
    %2572 = vmatpush1.msra.mxu0 %v2571
    %2573 = vmatprep.subr.mxu0 0.0
    %v2574 = vand.u32 %v1640, 4294901760
    %v2575 = vsub.f32 %v1640, %v2574
    %2576 = vmatpush1.msra.mxu0 %v2575
    %2577 = vmatprep.subr.mxu0 0.0
    %v2578 = vand.u32 %v1641, 4294901760
    %v2579 = vsub.f32 %v1641, %v2578
    %2580 = vmatpush1.msra.mxu0 %v2579
    %2581 = vmatprep.subr.mxu0 0.0
    %v2582 = vand.u32 %v1642, 4294901760
    %v2583 = vsub.f32 %v1642, %v2582
    %2584 = vmatpush1.msra.mxu0 %v2583
    %2585 = vmatprep.subr.mxu0 0.0
    %v2586 = vand.u32 %v1643, 4294901760
    %v2587 = vsub.f32 %v1643, %v2586
    %2588 = vmatpush1.msra.mxu0 %v2587
    %2589 = vmatprep.subr.mxu0 0.0
    %v2590 = vand.u32 %v1644, 4294901760
    %v2591 = vsub.f32 %v1644, %v2590
    %2592 = vmatpush1.msra.mxu0 %v2591
    %2593 = vmatprep.subr.mxu0 0.0
    %v2594 = vand.u32 %v1645, 4294901760
    %v2595 = vsub.f32 %v1645, %v2594
    %2596 = vmatpush1.msra.mxu0 %v2595
    %2597 = vmatprep.subr.mxu0 0.0
    %v2598 = vand.u32 %v1646, 4294901760
    %v2599 = vsub.f32 %v1646, %v2598
    %2600 = vmatpush1.msra.mxu0 %v2599
    %2601 = vmatprep.subr.mxu0 0.0
    %v2602 = vand.u32 %v1647, 4294901760
    %v2603 = vsub.f32 %v1647, %v2602
    %2604 = vmatpush1.msra.mxu0 %v2603
    %2605 = vmatprep.subr.mxu0 0.0
    %v2606 = vand.u32 %v1648, 4294901760
    %v2607 = vsub.f32 %v1648, %v2606
    %2608 = vmatpush1.msra.mxu0 %v2607
    %2609 = vmatprep.subr.mxu0 0.0
    %v2610 = vand.u32 %v1649, 4294901760
    %v2611 = vsub.f32 %v1649, %v2610
    %2612 = vmatpush1.msra.mxu0 %v2611
    %2613 = vmatprep.subr.mxu0 0.0
    %2614 = vmatpush1.msra.mxu0 0.0
    %2615 = vmatprep.subr.mxu0 0.0
    %2616 = vmatpush1.msra.mxu0 0.0
    %2617 = vmatprep.subr.mxu0 0.0
    %2618 = vmatpush1.msra.mxu0 0.0
    %2619 = vmatprep.subr.mxu0 0.0
    %2620 = vmatpush1.msra.mxu0 0.0
    %2621 = vmatprep.subr.mxu0 0.0
    %2622 = vmatpush1.msra.mxu0 0.0
    %2623 = vmatprep.subr.mxu0 0.0
    %2624 = vmatpush1.msra.mxu0 0.0
    %2625 = vmatprep.subr.mxu0 0.0
    %2626 = vmatpush1.msra.mxu0 0.0
    %2627 = vmatprep.subr.mxu0 0.0
    %2628 = vmatpush1.msra.mxu0 0.0
    %2629 = vmatprep.subr.mxu0 0.0
    %2630 = vmatpush1.msra.mxu0 0.0
    %2631 = vmatprep.subr.mxu0 0.0
    %2632 = vmatpush1.msra.mxu0 0.0
    %2633 = vmatprep.subr.mxu0 0.0
    %2634 = vmatpush1.msra.mxu0 0.0
    %2635 = vmatprep.subr.mxu0 0.0
    %2636 = vmatpush1.msra.mxu0 0.0
    %2637 = vmatprep.subr.mxu0 0.0
    %2638 = vmatpush1.msra.mxu0 0.0
    %2639 = vmatprep.subr.mxu0 0.0
    %2640 = vmatpush1.msra.mxu0 0.0
    %2641 = vmatprep.subr.mxu0 0.0
    %2642 = vmatpush1.msra.mxu0 0.0
    %2643 = vmatprep.subr.mxu0 0.0
    %2644 = vmatpush1.msra.mxu0 0.0
    %2645 = vmatprep.mubr.f32.mxu0 0.0
    %v2646 = vand.u32 %v38, 4294901760
    %v2647 = vsub.f32 %v38, %v2646
    %2648 = vmatmul.mubr.f32.gmra.mrb[0].mxu0 %v2647
    %v2649 = vpop.f32.mrb[0].mxu0
    %v2650 = vadd.f32 %v2546, %v2649
    %v2651 = vpop.f32.mrb[0].mxu0
    %2652 = vdwg.mxu0
    %2653 = vmatprep.subr.mxu0 0.0
    %v2654 = vand.u32 %v1634, 4294901760
    %2655 = vmatpush1.msra.mxu0 %v2654
    %2656 = vmatprep.subr.mxu0 0.0
    %v2657 = vand.u32 %v1635, 4294901760
    %2658 = vmatpush1.msra.mxu0 %v2657
    %2659 = vmatprep.subr.mxu0 0.0
    %v2660 = vand.u32 %v1636, 4294901760
    %2661 = vmatpush1.msra.mxu0 %v2660
    %2662 = vmatprep.subr.mxu0 0.0
    %v2663 = vand.u32 %v1637, 4294901760
    %2664 = vmatpush1.msra.mxu0 %v2663
    %2665 = vmatprep.subr.mxu0 0.0
    %v2666 = vand.u32 %v1638, 4294901760
    %2667 = vmatpush1.msra.mxu0 %v2666
    %2668 = vmatprep.subr.mxu0 0.0
    %v2669 = vand.u32 %v1639, 4294901760
    %2670 = vmatpush1.msra.mxu0 %v2669
    %2671 = vmatprep.subr.mxu0 0.0
    %v2672 = vand.u32 %v1640, 4294901760
    %2673 = vmatpush1.msra.mxu0 %v2672
    %2674 = vmatprep.subr.mxu0 0.0
    %v2675 = vand.u32 %v1641, 4294901760
    %2676 = vmatpush1.msra.mxu0 %v2675
    %2677 = vmatprep.subr.mxu0 0.0
    %v2678 = vand.u32 %v1642, 4294901760
    %2679 = vmatpush1.msra.mxu0 %v2678
    %2680 = vmatprep.subr.mxu0 0.0
    %v2681 = vand.u32 %v1643, 4294901760
    %2682 = vmatpush1.msra.mxu0 %v2681
    %2683 = vmatprep.subr.mxu0 0.0
    %v2684 = vand.u32 %v1644, 4294901760
    %2685 = vmatpush1.msra.mxu0 %v2684
    %2686 = vmatprep.subr.mxu0 0.0
    %v2687 = vand.u32 %v1645, 4294901760
    %2688 = vmatpush1.msra.mxu0 %v2687
    %2689 = vmatprep.subr.mxu0 0.0
    %v2690 = vand.u32 %v1646, 4294901760
    %2691 = vmatpush1.msra.mxu0 %v2690
    %2692 = vmatprep.subr.mxu0 0.0
    %v2693 = vand.u32 %v1647, 4294901760
    %2694 = vmatpush1.msra.mxu0 %v2693
    %2695 = vmatprep.subr.mxu0 0.0
    %v2696 = vand.u32 %v1648, 4294901760
    %2697 = vmatpush1.msra.mxu0 %v2696
    %2698 = vmatprep.subr.mxu0 0.0
    %v2699 = vand.u32 %v1649, 4294901760
    %2700 = vmatpush1.msra.mxu0 %v2699
    %2701 = vmatprep.subr.mxu0 0.0
    %2702 = vmatpush1.msra.mxu0 0.0
    %2703 = vmatprep.subr.mxu0 0.0
    %2704 = vmatpush1.msra.mxu0 0.0
    %2705 = vmatprep.subr.mxu0 0.0
    %2706 = vmatpush1.msra.mxu0 0.0
    %2707 = vmatprep.subr.mxu0 0.0
    %2708 = vmatpush1.msra.mxu0 0.0
    %2709 = vmatprep.subr.mxu0 0.0
    %2710 = vmatpush1.msra.mxu0 0.0
    %2711 = vmatprep.subr.mxu0 0.0
    %2712 = vmatpush1.msra.mxu0 0.0
    %2713 = vmatprep.subr.mxu0 0.0
    %2714 = vmatpush1.msra.mxu0 0.0
    %2715 = vmatprep.subr.mxu0 0.0
    %2716 = vmatpush1.msra.mxu0 0.0
    %2717 = vmatprep.subr.mxu0 0.0
    %2718 = vmatpush1.msra.mxu0 0.0
    %2719 = vmatprep.subr.mxu0 0.0
    %2720 = vmatpush1.msra.mxu0 0.0
    %2721 = vmatprep.subr.mxu0 0.0
    %2722 = vmatpush1.msra.mxu0 0.0
    %2723 = vmatprep.subr.mxu0 0.0
    %2724 = vmatpush1.msra.mxu0 0.0
    %2725 = vmatprep.subr.mxu0 0.0
    %2726 = vmatpush1.msra.mxu0 0.0
    %2727 = vmatprep.subr.mxu0 0.0
    %2728 = vmatpush1.msra.mxu0 0.0
    %2729 = vmatprep.subr.mxu0 0.0
    %2730 = vmatpush1.msra.mxu0 0.0
    %2731 = vmatprep.subr.mxu0 0.0
    %2732 = vmatpush1.msra.mxu0 0.0
    %2733 = vmatprep.mubr.f32.mxu0 0.0
    %v2734 = vand.u32 %v38, 4294901760
    %v2735 = vsub.f32 %v38, %v2734
    %v2736 = vand.u32 %v2735, 4294901760
    %2737 = vmatmul.mubr.f32.gmra.mrb[0].mxu0 %v2736
    %v2738 = vpop.f32.mrb[0].mxu0
    %v2739 = vadd.f32 %v2650, %v2738
    %v2740 = vpop.f32.mrb[0].mxu0
    %2741 = vdwg.mxu0
    %2742 = vmatprep.subr.mxu0 0.0
    %v2743 = vand.u32 %v1634, 4294901760
    %v2744 = vsub.f32 %v1634, %v2743
    %v2745 = vand.u32 %v2744, 4294901760
    %2746 = vmatpush1.msra.mxu0 %v2745
    %2747 = vmatprep.subr.mxu0 0.0
    %v2748 = vand.u32 %v1635, 4294901760
    %v2749 = vsub.f32 %v1635, %v2748
    %v2750 = vand.u32 %v2749, 4294901760
    %2751 = vmatpush1.msra.mxu0 %v2750
    %2752 = vmatprep.subr.mxu0 0.0
    %v2753 = vand.u32 %v1636, 4294901760
    %v2754 = vsub.f32 %v1636, %v2753
    %v2755 = vand.u32 %v2754, 4294901760
    %2756 = vmatpush1.msra.mxu0 %v2755
    %2757 = vmatprep.subr.mxu0 0.0
    %v2758 = vand.u32 %v1637, 4294901760
    %v2759 = vsub.f32 %v1637, %v2758
    %v2760 = vand.u32 %v2759, 4294901760
    %2761 = vmatpush1.msra.mxu0 %v2760
    %2762 = vmatprep.subr.mxu0 0.0
    %v2763 = vand.u32 %v1638, 4294901760
    %v2764 = vsub.f32 %v1638, %v2763
    %v2765 = vand.u32 %v2764, 4294901760
    %2766 = vmatpush1.msra.mxu0 %v2765
    %2767 = vmatprep.subr.mxu0 0.0
    %v2768 = vand.u32 %v1639, 4294901760
    %v2769 = vsub.f32 %v1639, %v2768
    %v2770 = vand.u32 %v2769, 4294901760
    %2771 = vmatpush1.msra.mxu0 %v2770
    %2772 = vmatprep.subr.mxu0 0.0
    %v2773 = vand.u32 %v1640, 4294901760
    %v2774 = vsub.f32 %v1640, %v2773
    %v2775 = vand.u32 %v2774, 4294901760
    %2776 = vmatpush1.msra.mxu0 %v2775
    %2777 = vmatprep.subr.mxu0 0.0
    %v2778 = vand.u32 %v1641, 4294901760
    %v2779 = vsub.f32 %v1641, %v2778
    %v2780 = vand.u32 %v2779, 4294901760
    %2781 = vmatpush1.msra.mxu0 %v2780
    %2782 = vmatprep.subr.mxu0 0.0
    %v2783 = vand.u32 %v1642, 4294901760
    %v2784 = vsub.f32 %v1642, %v2783
    %v2785 = vand.u32 %v2784, 4294901760
    %2786 = vmatpush1.msra.mxu0 %v2785
    %2787 = vmatprep.subr.mxu0 0.0
    %v2788 = vand.u32 %v1643, 4294901760
    %v2789 = vsub.f32 %v1643, %v2788
    %v2790 = vand.u32 %v2789, 4294901760
    %2791 = vmatpush1.msra.mxu0 %v2790
    %2792 = vmatprep.subr.mxu0 0.0
    %v2793 = vand.u32 %v1644, 4294901760
    %v2794 = vsub.f32 %v1644, %v2793
    %v2795 = vand.u32 %v2794, 4294901760
    %2796 = vmatpush1.msra.mxu0 %v2795
    %2797 = vmatprep.subr.mxu0 0.0
    %v2798 = vand.u32 %v1645, 4294901760
    %v2799 = vsub.f32 %v1645, %v2798
    %v2800 = vand.u32 %v2799, 4294901760
    %2801 = vmatpush1.msra.mxu0 %v2800
    %2802 = vmatprep.subr.mxu0 0.0
    %v2803 = vand.u32 %v1646, 4294901760
    %v2804 = vsub.f32 %v1646, %v2803
    %v2805 = vand.u32 %v2804, 4294901760
    %2806 = vmatpush1.msra.mxu0 %v2805
    %2807 = vmatprep.subr.mxu0 0.0
    %v2808 = vand.u32 %v1647, 4294901760
    %v2809 = vsub.f32 %v1647, %v2808
    %v2810 = vand.u32 %v2809, 4294901760
    %2811 = vmatpush1.msra.mxu0 %v2810
    %2812 = vmatprep.subr.mxu0 0.0
    %v2813 = vand.u32 %v1648, 4294901760
    %v2814 = vsub.f32 %v1648, %v2813
    %v2815 = vand.u32 %v2814, 4294901760
    %2816 = vmatpush1.msra.mxu0 %v2815
    %2817 = vmatprep.subr.mxu0 0.0
    %v2818 = vand.u32 %v1649, 4294901760
    %v2819 = vsub.f32 %v1649, %v2818
    %v2820 = vand.u32 %v2819, 4294901760
    %2821 = vmatpush1.msra.mxu0 %v2820
    %2822 = vmatprep.subr.mxu0 0.0
    %2823 = vmatpush1.msra.mxu0 0.0
    %2824 = vmatprep.subr.mxu0 0.0
    %2825 = vmatpush1.msra.mxu0 0.0
    %2826 = vmatprep.subr.mxu0 0.0
    %2827 = vmatpush1.msra.mxu0 0.0
    %2828 = vmatprep.subr.mxu0 0.0
    %2829 = vmatpush1.msra.mxu0 0.0
    %2830 = vmatprep.subr.mxu0 0.0
    %2831 = vmatpush1.msra.mxu0 0.0
    %2832 = vmatprep.subr.mxu0 0.0
    %2833 = vmatpush1.msra.mxu0 0.0
    %2834 = vmatprep.subr.mxu0 0.0
    %2835 = vmatpush1.msra.mxu0 0.0
    %2836 = vmatprep.subr.mxu0 0.0
    %2837 = vmatpush1.msra.mxu0 0.0
    %2838 = vmatprep.subr.mxu0 0.0
    %2839 = vmatpush1.msra.mxu0 0.0
    %2840 = vmatprep.subr.mxu0 0.0
    %2841 = vmatpush1.msra.mxu0 0.0
    %2842 = vmatprep.subr.mxu0 0.0
    %2843 = vmatpush1.msra.mxu0 0.0
    %2844 = vmatprep.subr.mxu0 0.0
    %2845 = vmatpush1.msra.mxu0 0.0
    %2846 = vmatprep.subr.mxu0 0.0
    %2847 = vmatpush1.msra.mxu0 0.0
    %2848 = vmatprep.subr.mxu0 0.0
    %2849 = vmatpush1.msra.mxu0 0.0
    %2850 = vmatprep.subr.mxu0 0.0
    %2851 = vmatpush1.msra.mxu0 0.0
    %2852 = vmatprep.subr.mxu0 0.0
    %2853 = vmatpush1.msra.mxu0 0.0
    %2854 = vmatprep.mubr.f32.mxu0 0.0
    %v2855 = vand.u32 %v38, 4294901760
    %2856 = vmatmul.mubr.f32.gmra.mrb[0].mxu0 %v2855
    %v2857 = vpop.f32.mrb[0].mxu0
    %v2858 = vadd.f32 %v2739, %v2857
    %v2859 = vpop.f32.mrb[0].mxu0
    %2860 = vdwg.mxu0
    %2861 = vmatprep.subr.mxu0 0.0
    %v2862 = vand.u32 %v1634, 4294901760
    %2863 = vmatpush1.msra.mxu0 %v2862
    %2864 = vmatprep.subr.mxu0 0.0
    %v2865 = vand.u32 %v1635, 4294901760
    %2866 = vmatpush1.msra.mxu0 %v2865
    %2867 = vmatprep.subr.mxu0 0.0
    %v2868 = vand.u32 %v1636, 4294901760
    %2869 = vmatpush1.msra.mxu0 %v2868
    %2870 = vmatprep.subr.mxu0 0.0
    %v2871 = vand.u32 %v1637, 4294901760
    %2872 = vmatpush1.msra.mxu0 %v2871
    %2873 = vmatprep.subr.mxu0 0.0
    %v2874 = vand.u32 %v1638, 4294901760
    %2875 = vmatpush1.msra.mxu0 %v2874
    %2876 = vmatprep.subr.mxu0 0.0
    %v2877 = vand.u32 %v1639, 4294901760
    %2878 = vmatpush1.msra.mxu0 %v2877
    %2879 = vmatprep.subr.mxu0 0.0
    %v2880 = vand.u32 %v1640, 4294901760
    %2881 = vmatpush1.msra.mxu0 %v2880
    %2882 = vmatprep.subr.mxu0 0.0
    %v2883 = vand.u32 %v1641, 4294901760
    %2884 = vmatpush1.msra.mxu0 %v2883
    %2885 = vmatprep.subr.mxu0 0.0
    %v2886 = vand.u32 %v1642, 4294901760
    %2887 = vmatpush1.msra.mxu0 %v2886
    %2888 = vmatprep.subr.mxu0 0.0
    %v2889 = vand.u32 %v1643, 4294901760
    %2890 = vmatpush1.msra.mxu0 %v2889
    %2891 = vmatprep.subr.mxu0 0.0
    %v2892 = vand.u32 %v1644, 4294901760
    %2893 = vmatpush1.msra.mxu0 %v2892
    %2894 = vmatprep.subr.mxu0 0.0
    %v2895 = vand.u32 %v1645, 4294901760
    %2896 = vmatpush1.msra.mxu0 %v2895
    %2897 = vmatprep.subr.mxu0 0.0
    %v2898 = vand.u32 %v1646, 4294901760
    %2899 = vmatpush1.msra.mxu0 %v2898
    %2900 = vmatprep.subr.mxu0 0.0
    %v2901 = vand.u32 %v1647, 4294901760
    %2902 = vmatpush1.msra.mxu0 %v2901
    %2903 = vmatprep.subr.mxu0 0.0
    %v2904 = vand.u32 %v1648, 4294901760
    %2905 = vmatpush1.msra.mxu0 %v2904
    %2906 = vmatprep.subr.mxu0 0.0
    %v2907 = vand.u32 %v1649, 4294901760
    %2908 = vmatpush1.msra.mxu0 %v2907
    %2909 = vmatprep.subr.mxu0 0.0
    %2910 = vmatpush1.msra.mxu0 0.0
    %2911 = vmatprep.subr.mxu0 0.0
    %2912 = vmatpush1.msra.mxu0 0.0
    %2913 = vmatprep.subr.mxu0 0.0
    %2914 = vmatpush1.msra.mxu0 0.0
    %2915 = vmatprep.subr.mxu0 0.0
    %2916 = vmatpush1.msra.mxu0 0.0
    %2917 = vmatprep.subr.mxu0 0.0
    %2918 = vmatpush1.msra.mxu0 0.0
    %2919 = vmatprep.subr.mxu0 0.0
    %2920 = vmatpush1.msra.mxu0 0.0
    %2921 = vmatprep.subr.mxu0 0.0
    %2922 = vmatpush1.msra.mxu0 0.0
    %2923 = vmatprep.subr.mxu0 0.0
    %2924 = vmatpush1.msra.mxu0 0.0
    %2925 = vmatprep.subr.mxu0 0.0
    %2926 = vmatpush1.msra.mxu0 0.0
    %2927 = vmatprep.subr.mxu0 0.0
    %2928 = vmatpush1.msra.mxu0 0.0
    %2929 = vmatprep.subr.mxu0 0.0
    %2930 = vmatpush1.msra.mxu0 0.0
    %2931 = vmatprep.subr.mxu0 0.0
    %2932 = vmatpush1.msra.mxu0 0.0
    %2933 = vmatprep.subr.mxu0 0.0
    %2934 = vmatpush1.msra.mxu0 0.0
    %2935 = vmatprep.subr.mxu0 0.0
    %2936 = vmatpush1.msra.mxu0 0.0
    %2937 = vmatprep.subr.mxu0 0.0
    %2938 = vmatpush1.msra.mxu0 0.0
    %2939 = vmatprep.subr.mxu0 0.0
    %2940 = vmatpush1.msra.mxu0 0.0
    %2941 = vmatprep.mubr.f32.mxu0 0.0
    %v2942 = vand.u32 %v38, 4294901760
    %2943 = vmatmul.mubr.f32.gmra.mrb[0].mxu0 %v2942
    %v2944 = vpop.f32.mrb[0].mxu0
    %v2945 = vadd.f32 %v2858, %v2944
    %v2946 = vpop.f32.mrb[0].mxu0
    %2947 = vdwg.mxu0
    %v2948 = vtanh.pop %v2945
    %v2949 = vtanh.pop %v2948
    %2950 = vst [vmem:[#allocation5] sm:$0x1] %v2949
    // Predicated region
    $region30: #{tpu_custom_call.1} parent=1 // pred_check
      _
    $region31: #{tpu_custom_call.1} parent=1 // pred_check_branch
      %2952 = sbr.rel (0) target = $region33
    $region32: #{tpu_custom_call.1} parent=1 // pred_region
      %s2954 = ssub.s32 16, 16
      %2955 = vsyncadd [#allocation4], %s2954
      %s2957 = sshll.u32 [#allocation5], 4
      %s2958 = int_to_ptr.vmem [resolvable:$true] %s2957
      %2960 = dma.vmem_to_hbm [thread:$0]  %s2958, 16, %s6, [#allocation4]
    $region33: #{tpu_custom_call.1} parent=1 // pred_fallthru
      _
    // Predicated region
    $region34: #{tpu_custom_call.1} parent=1 // pred_check
      _
    $region35: #{tpu_custom_call.1} parent=1 // pred_check_branch
      %2962 = sbr.rel (0) target = $region37
    $region36: #{tpu_custom_call.1} parent=1 // pred_region
      %2963 = dma.done [#allocation4], 16
    $region37: #{tpu_custom_call.1} parent=1 // pred_fallthru
      _
    %2964 = vsyncpa [#allocation3], 1
    %2965 = vsyncpa [#allocation4], 1

</llo_original>
